<compile_context>
chip_gen: v7x
topology: tpu7x:2x2x1
jax: 0.10.0
libtpu: 0.0.40
codegen_flags: <defaults>
</compile_context>

<pallas_src>
import math
import jax
import jax.numpy as jnp
from jax.experimental import pallas as pl
from jax.experimental.pallas import tpu as pltpu

H1, H2, H3 = 256, 128, 64   # module hidden_sizes
H3P = 128                   # third hidden padded to lane-dense 128
BN_EPS = 1e-5
LEAKY_SLOPE = 0.1
TB_MAX = 2048               # max batch tile (sweepable)
TB_MIN = 256                # MXU-aligned minimum tile
C_PAD = 128                 # lane-dense padded class dimension
NEG_BIG = -1e30             # bias for padded logit lanes (exp underflows to 0)


def _round_up(n, m):
    return ((n + m - 1) // m) * m


def _mlp_kernel(x_ref, w1_ref, b1_ref, w2_ref, b2_ref, w3_ref, b3_ref,
                wo_ref, bo_ref, out_ref):
    """Full MLP forward for one (tb, F) batch tile; weights stay VMEM-resident."""
    x = x_ref[...]  # f32 (tb, F)

    def leaky(v):
        # slope < 1  =>  max(v, slope*v) == LeakyReLU(v)
        return jnp.maximum(v, LEAKY_SLOPE * v)

    # Hidden blocks: Linear (BN folded into W) + LeakyReLU.  Dropout = identity (eval).
    h = leaky(jnp.dot(x.astype(jnp.bfloat16), w1_ref[...],
                      preferred_element_type=jnp.float32) + b1_ref[...])
    h = leaky(jnp.dot(h.astype(jnp.bfloat16), w2_ref[...],
                      preferred_element_type=jnp.float32) + b2_ref[...])
    h = leaky(jnp.dot(h.astype(jnp.bfloat16), w3_ref[...],
                      preferred_element_type=jnp.float32) + b3_ref[...])

    # Output Linear (padded to C_PAD lanes; padded lanes carry bias = -1e30).
    logits = jnp.dot(h.astype(jnp.bfloat16), wo_ref[...],
                     preferred_element_type=jnp.float32) + bo_ref[...]

    # softmax over classes; padded lanes produce exp(~-inf) == 0.
    m = jnp.max(logits, axis=-1, keepdims=True)
    e = jnp.exp(logits - m)
    inv = pl.reciprocal(jnp.sum(e, axis=-1, keepdims=True), approx=True)
    out_ref[...] = (e * inv).astype(out_ref.dtype)


def init_params(key, input_size, num_classes):
    """Deterministic parameter init mirroring the PyTorch module's __init__.

    Linear weights: Xavier-normal, biases zero.  BatchNorm1d (eval, default
    running stats) is a pure 1/sqrt(1+eps) scale folded into the Linear
    weights.  Weights are stored transposed as (in, out), bf16 for the MXU.
    The third hidden layer is zero-padded 64 -> 128 and the output layer is
    zero-padded to 128 classes (padded class lanes killed via -1e30 bias).
    """
    # TODO(synk): if loading *trained* PyTorch weights, fold the actual
    # running_mean/var/gamma/beta of each BatchNorm1d here instead of the
    # fresh-module defaults (mean=0, var=1, gamma=1, beta=0).
    s = 1.0 / math.sqrt(1.0 + BN_EPS)  # BN(eval, default stats) scale
    k1, k2, k3, ko = jax.random.split(key, 4)
    params = {}

    def xavier(k, fi, fo):
        std = math.sqrt(2.0 / (fi + fo))
        return std * jax.random.normal(k, (fi, fo), jnp.float32)

    # Layer 1: folds the input BN and its own BN -> scale s*s.
    w1 = xavier(k1, input_size, H1) * (s * s)
    params["w1"] = w1.astype(jnp.bfloat16)
    params["b1"] = jnp.zeros((1, H1), jnp.float32)

    w2 = xavier(k2, H1, H2) * s
    params["w2"] = w2.astype(jnp.bfloat16)
    params["b2"] = jnp.zeros((1, H2), jnp.float32)

    # Layer 3: padded 64 -> 128 output lanes.  Padded columns are zero and the
    # bias is zero, so LeakyReLU keeps those lanes at exactly 0.
    w3 = xavier(k3, H2, H3) * s
    w3p = jnp.zeros((H2, H3P), jnp.float32).at[:, :H3].set(w3)
    params["w3"] = w3p.astype(jnp.bfloat16)
    params["b3"] = jnp.zeros((1, H3P), jnp.float32)

    # Output layer: rows >= H3 are zero (padded h3 lanes contribute nothing),
    # cols >= num_classes are killed via -1e30 bias before softmax.
    wo = xavier(ko, H3, num_classes)
    wo_pad = jnp.zeros((H3P, C_PAD), jnp.float32).at[:H3, :num_classes].set(wo)
    bo_pad = jnp.full((1, C_PAD), NEG_BIG, jnp.float32).at[:, :num_classes].set(0.0)
    params["wo"] = wo_pad.astype(jnp.bfloat16)
    params["bo"] = bo_pad
    return params


def accident_severity_forward(x, params, num_classes):
    b, f = x.shape

    # Adaptive batch tile: big enough to amortize per-grid-step overhead, but
    # clamp so a tiny batch is not padded up to TB_MAX rows.
    tb = min(TB_MAX, _round_up(b, TB_MIN))
    b_pad = _round_up(b, tb)
    # v7x has 2 TensorCores: make sure a "parallel" grid has >= 2 steps when
    # there is enough work to split (tb stays a multiple of 128, >= TB_MIN//1).
    if b_pad // tb == 1 and tb >= 2 * TB_MIN:
        tb //= 2
    grid = (b_pad // tb,)

    # padded rows are zeros; their softmax output is harmless and sliced away.
    if b_pad != b:
        x = jnp.pad(x, ((0, b_pad - b), (0, 0)))

    args = (x,
            params["w1"], params["b1"],
            params["w2"], params["b2"],
            params["w3"], params["b3"],
            params["wo"], params["bo"])

    def resident(shape):  # weights/biases: same block every grid step -> stay in VMEM
        return pl.BlockSpec(shape, lambda i: (0, 0))

    in_specs = [
        pl.BlockSpec((tb, f), lambda i: (i, 0)),          # x tile (pipelined)
        resident((f, H1)), resident((1, H1)),
        resident((H1, H2)), resident((1, H2)),
        resident((H2, H3P)), resident((1, H3P)),
        resident((H3P, C_PAD)), resident((1, C_PAD)),
    ]
    out_spec = pl.BlockSpec((tb, C_PAD), lambda i: (i, 0))

    weight_bytes = (2 * (f * H1 + H1 * H2 + H2 * H3P + H3P * C_PAD)
                    + 4 * (H1 + H2 + H3P + C_PAD))
    flops = 2 * b_pad * (f * H1 + H1 * H2 + H2 * H3P + H3P * C_PAD)
    cost = pl.CostEstimate(
        flops=flops,
        transcendentals=b_pad * (C_PAD + 1),
        bytes_accessed=b_pad * f * 4 + weight_bytes + b_pad * C_PAD * 2,
    )

    # Explicit VMEM budget (matters on v7x's 64 MiB physical / 32 MiB default):
    # double-buffered x (f32) + out (bf16), resident weights (double buffers),
    # plus in-body activation temporaries (f32 + bf16 matmul copies).
    act_bytes = tb * (H1 + H2 + H3P + C_PAD) * 6
    vmem_est = 2 * tb * f * 4 + 2 * tb * C_PAD * 2 + 2 * weight_bytes + act_bytes
    vmem_limit = int(min(max(2 * vmem_est, 32 * 1024 * 1024), 64 * 1024 * 1024))

    out = pl.pallas_call(
        _mlp_kernel,
        out_shape=jax.ShapeDtypeStruct((b_pad, C_PAD), jnp.bfloat16),
        grid=grid,
        in_specs=in_specs,
        out_specs=out_spec,
        compiler_params=pltpu.CompilerParams(
            dimension_semantics=("parallel",),
            vmem_limit_bytes=vmem_limit),
        cost_estimate=cost,
    )(*args)

    # bf16 slice halves the re-read vs. the old f32 path; callers that can
    # consume the padded (b_pad, C_PAD) slab directly should skip this slice.
    return out[:b, :num_classes]


def reference_forward(x, params, num_classes):
    """Pure-JAX reference using the same (bf16, BN-folded, padded) params."""
    def leaky(v):
        return jnp.maximum(v, LEAKY_SLOPE * v)
    h = leaky(jnp.dot(x.astype(jnp.bfloat16), params["w1"],
                      preferred_element_type=jnp.float32) + params["b1"])
    h = leaky(jnp.dot(h.astype(jnp.bfloat16), params["w2"],
                      preferred_element_type=jnp.float32) + params["b2"])
    h = leaky(jnp.dot(h.astype(jnp.bfloat16), params["w3"],
                      preferred_element_type=jnp.float32) + params["b3"])
    logits = jnp.dot(h.astype(jnp.bfloat16), params["wo"],
                     preferred_element_type=jnp.float32) + params["bo"]
    return jax.nn.softmax(logits, axis=-1)[:, :num_classes]


if __name__ == "__main__":
    INPUT_SIZE = 32
    NUM_CLASSES = 4
    BATCH = 8

    key = jax.random.PRNGKey(0)
    k_param, k_x = jax.random.split(key)

    params = init_params(k_param, INPUT_SIZE, NUM_CLASSES)
    x = jax.random.normal(k_x, (BATCH, INPUT_SIZE), jnp.float32)

    out = jax.block_until_ready(accident_severity_forward(x, params, NUM_CLASSES))
    ref = jax.block_until_ready(reference_forward(x, params, NUM_CLASSES))

    out_f32 = out.astype(jnp.float32)
    assert out.shape == (BATCH, NUM_CLASSES)
    # Tolerances absorb bf16 output quantization (~4e-3 rel) and the
    # approx-reciprocal softmax normalization (~1e-3 rel).
    assert jnp.allclose(out_f32, ref.astype(jnp.float32), atol=1e-2, rtol=1e-2)
    assert jnp.allclose(jnp.sum(out_f32, axis=1), 1.0, atol=2e-2)

    print("KERNEL_OK")
</pallas_src>

<mosaic_0001>
module attributes {stable_mosaic.version = 11 : i64} {
  func.func @_mlp_kernel(%arg0: i32, %arg1: memref<256x32xf32, #tpu.memory_space<vmem>>, %arg2: memref<32x256xbf16, #tpu.memory_space<vmem>>, %arg3: memref<1x256xf32, #tpu.memory_space<vmem>>, %arg4: memref<256x128xbf16, #tpu.memory_space<vmem>>, %arg5: memref<1x128xf32, #tpu.memory_space<vmem>>, %arg6: memref<128x128xbf16, #tpu.memory_space<vmem>>, %arg7: memref<1x128xf32, #tpu.memory_space<vmem>>, %arg8: memref<128x128xbf16, #tpu.memory_space<vmem>>, %arg9: memref<1x128xf32, #tpu.memory_space<vmem>>, %arg10: memref<256x128xbf16, #tpu.memory_space<vmem>>) attributes {dimension_semantics = [#tpu.dimension_semantics<parallel>], iteration_bounds = array<i64: 1>, scalar_prefetch = 0 : i64, scratch_operands = 0 : i64, tpu.core_type = #tpu.core_type<tc>, window_params = [{transform_indices = @transform_0, window_bounds = array<i64: 256, 32>}, {pipeline_mode = #tpu.pipeline_mode<synchronous>, transform_indices = @transform_1, window_bounds = array<i64: 32, 256>}, {pipeline_mode = #tpu.pipeline_mode<synchronous>, transform_indices = @transform_2, window_bounds = array<i64: 1, 256>}, {pipeline_mode = #tpu.pipeline_mode<synchronous>, transform_indices = @transform_3, window_bounds = array<i64: 256, 128>}, {pipeline_mode = #tpu.pipeline_mode<synchronous>, transform_indices = @transform_4, window_bounds = array<i64: 1, 128>}, {pipeline_mode = #tpu.pipeline_mode<synchronous>, transform_indices = @transform_5, window_bounds = array<i64: 128, 128>}, {pipeline_mode = #tpu.pipeline_mode<synchronous>, transform_indices = @transform_6, window_bounds = array<i64: 1, 128>}, {pipeline_mode = #tpu.pipeline_mode<synchronous>, transform_indices = @transform_7, window_bounds = array<i64: 128, 128>}, {pipeline_mode = #tpu.pipeline_mode<synchronous>, transform_indices = @transform_8, window_bounds = array<i64: 1, 128>}, {transform_indices = @transform_9, window_bounds = array<i64: 256, 128>}]} {
    %c0 = arith.constant 0 : index
    %c0_0 = arith.constant 0 : index
    %0 = vector.load %arg1[%c0, %c0_0] : memref<256x32xf32, #tpu.memory_space<vmem>>, vector<256x32xf32>
    %1 = arith.truncf %0 : vector<256x32xf32> to vector<256x32xbf16>
    %c0_1 = arith.constant 0 : index
    %c0_2 = arith.constant 0 : index
    %2 = vector.load %arg2[%c0_1, %c0_2] : memref<32x256xbf16, #tpu.memory_space<vmem>>, vector<32x256xbf16>
    %cst = arith.constant dense<0.000000e+00> : vector<256x256xf32>
    %3 = tpu.matmul %1, %2, %cst {dimension_numbers = #tpu.dot_dimension_numbers<[1], [0], [0], [1], [0, 0, 1, 1], [], []>} : vector<256x32xbf16>, vector<32x256xbf16>, vector<256x256xf32> -> vector<256x256xf32>
    %c0_3 = arith.constant 0 : index
    %c0_4 = arith.constant 0 : index
    %4 = vector.load %arg3[%c0_3, %c0_4] : memref<1x256xf32, #tpu.memory_space<vmem>>, vector<1x256xf32>
    %5 = vector.broadcast %4 : vector<1x256xf32> to vector<256x256xf32>
    %6 = arith.addf %3, %5 : vector<256x256xf32>
    %cst_5 = arith.constant 1.000000e-01 : f32
    %7 = vector.broadcast %cst_5 : f32 to vector<256x256xf32>
    %8 = arith.mulf %7, %6 : vector<256x256xf32>
    %9 = arith.maximumf %6, %8 : vector<256x256xf32>
    %10 = arith.truncf %9 : vector<256x256xf32> to vector<256x256xbf16>
    %c0_6 = arith.constant 0 : index
    %c0_7 = arith.constant 0 : index
    %11 = vector.load %arg4[%c0_6, %c0_7] : memref<256x128xbf16, #tpu.memory_space<vmem>>, vector<256x128xbf16>
    %cst_8 = arith.constant dense<0.000000e+00> : vector<256x128xf32>
    %12 = tpu.matmul %10, %11, %cst_8 {dimension_numbers = #tpu.dot_dimension_numbers<[1], [0], [0], [1], [0, 0, 1, 1], [], []>} : vector<256x256xbf16>, vector<256x128xbf16>, vector<256x128xf32> -> vector<256x128xf32>
    %c0_9 = arith.constant 0 : index
    %c0_10 = arith.constant 0 : index
    %13 = vector.load %arg5[%c0_9, %c0_10] : memref<1x128xf32, #tpu.memory_space<vmem>>, vector<1x128xf32>
    %14 = vector.broadcast %13 : vector<1x128xf32> to vector<256x128xf32>
    %15 = arith.addf %12, %14 : vector<256x128xf32>
    %cst_11 = arith.constant 1.000000e-01 : f32
    %16 = vector.broadcast %cst_11 : f32 to vector<256x128xf32>
    %17 = arith.mulf %16, %15 : vector<256x128xf32>
    %18 = arith.maximumf %15, %17 : vector<256x128xf32>
    %19 = arith.truncf %18 : vector<256x128xf32> to vector<256x128xbf16>
    %c0_12 = arith.constant 0 : index
    %c0_13 = arith.constant 0 : index
    %20 = vector.load %arg6[%c0_12, %c0_13] : memref<128x128xbf16, #tpu.memory_space<vmem>>, vector<128x128xbf16>
    %cst_14 = arith.constant dense<0.000000e+00> : vector<256x128xf32>
    %21 = tpu.matmul %19, %20, %cst_14 {dimension_numbers = #tpu.dot_dimension_numbers<[1], [0], [0], [1], [0, 0, 1, 1], [], []>} : vector<256x128xbf16>, vector<128x128xbf16>, vector<256x128xf32> -> vector<256x128xf32>
    %c0_15 = arith.constant 0 : index
    %c0_16 = arith.constant 0 : index
    %22 = vector.load %arg7[%c0_15, %c0_16] : memref<1x128xf32, #tpu.memory_space<vmem>>, vector<1x128xf32>
    %23 = vector.broadcast %22 : vector<1x128xf32> to vector<256x128xf32>
    %24 = arith.addf %21, %23 : vector<256x128xf32>
    %cst_17 = arith.constant 1.000000e-01 : f32
    %25 = vector.broadcast %cst_17 : f32 to vector<256x128xf32>
    %26 = arith.mulf %25, %24 : vector<256x128xf32>
    %27 = arith.maximumf %24, %26 : vector<256x128xf32>
    %28 = arith.truncf %27 : vector<256x128xf32> to vector<256x128xbf16>
    %c0_18 = arith.constant 0 : index
    %c0_19 = arith.constant 0 : index
    %29 = vector.load %arg8[%c0_18, %c0_19] : memref<128x128xbf16, #tpu.memory_space<vmem>>, vector<128x128xbf16>
    %cst_20 = arith.constant dense<0.000000e+00> : vector<256x128xf32>
    %30 = tpu.matmul %28, %29, %cst_20 {dimension_numbers = #tpu.dot_dimension_numbers<[1], [0], [0], [1], [0, 0, 1, 1], [], []>} : vector<256x128xbf16>, vector<128x128xbf16>, vector<256x128xf32> -> vector<256x128xf32>
    %c0_21 = arith.constant 0 : index
    %c0_22 = arith.constant 0 : index
    %31 = vector.load %arg9[%c0_21, %c0_22] : memref<1x128xf32, #tpu.memory_space<vmem>>, vector<1x128xf32>
    %32 = vector.broadcast %31 : vector<1x128xf32> to vector<256x128xf32>
    %33 = arith.addf %30, %32 : vector<256x128xf32>
    %cst_23 = arith.constant dense<0xFF800000> : vector<256xf32>
    %34 = vector.multi_reduction <maximumf>, %33, %cst_23 [1] : vector<256x128xf32> to vector<256xf32>
    %35 = vector.shape_cast %34 : vector<256xf32> to vector<256x1xf32>
    %36 = vector.broadcast %35 : vector<256x1xf32> to vector<256x128xf32>
    %37 = arith.subf %33, %36 : vector<256x128xf32>
    %38 = math.exp %37 : vector<256x128xf32>
    %cst_24 = arith.constant dense<0.000000e+00> : vector<256xf32>
    %39 = vector.multi_reduction <add>, %38, %cst_24 [1] : vector<256x128xf32> to vector<256xf32>
    %40 = vector.shape_cast %39 : vector<256xf32> to vector<256x1xf32>
    %41 = tpu.reciprocal %40 {approx = true} : vector<256x1xf32> -> vector<256x1xf32>
    %42 = vector.broadcast %41 : vector<256x1xf32> to vector<256x128xf32>
    %43 = arith.mulf %38, %42 : vector<256x128xf32>
    %44 = arith.truncf %43 : vector<256x128xf32> to vector<256x128xbf16>
    %c0_25 = arith.constant 0 : index
    %c0_26 = arith.constant 0 : index
    %45 = vector.load %arg10[%c0_25, %c0_26] : memref<256x128xbf16, #tpu.memory_space<vmem>>, vector<256x128xbf16>
    tpu.vector_store %arg10[%c0_25, %c0_26], %44 {strides = array<i32>} : memref<256x128xbf16, #tpu.memory_space<vmem>>, vector<256x128xbf16>,
    return
  }
  func.func @transform_0(%arg0: i32) -> (i32, i32) {
    %c0_i32 = arith.constant 0 : i32
    %c0_i32_0 = arith.constant 0 : i32
    return %arg0, %c0_i32 : i32, i32
  }
  func.func @transform_1(%arg0: i32) -> (i32, i32) {
    %c0_i32 = arith.constant 0 : i32
    %c0_i32_0 = arith.constant 0 : i32
    %c0_i32_1 = arith.constant 0 : i32
    return %c0_i32, %c0_i32_0 : i32, i32
  }
  func.func @transform_2(%arg0: i32) -> (i32, i32) {
    %c0_i32 = arith.constant 0 : i32
    %c0_i32_0 = arith.constant 0 : i32
    %c0_i32_1 = arith.constant 0 : i32
    return %c0_i32, %c0_i32_0 : i32, i32
  }
  func.func @transform_3(%arg0: i32) -> (i32, i32) {
    %c0_i32 = arith.constant 0 : i32
    %c0_i32_0 = arith.constant 0 : i32
    %c0_i32_1 = arith.constant 0 : i32
    return %c0_i32, %c0_i32_0 : i32, i32
  }
  func.func @transform_4(%arg0: i32) -> (i32, i32) {
    %c0_i32 = arith.constant 0 : i32
    %c0_i32_0 = arith.constant 0 : i32
    %c0_i32_1 = arith.constant 0 : i32
    return %c0_i32, %c0_i32_0 : i32, i32
  }
  func.func @transform_5(%arg0: i32) -> (i32, i32) {
    %c0_i32 = arith.constant 0 : i32
    %c0_i32_0 = arith.constant 0 : i32
    %c0_i32_1 = arith.constant 0 : i32
    return %c0_i32, %c0_i32_0 : i32, i32
  }
  func.func @transform_6(%arg0: i32) -> (i32, i32) {
    %c0_i32 = arith.constant 0 : i32
    %c0_i32_0 = arith.constant 0 : i32
    %c0_i32_1 = arith.constant 0 : i32
    return %c0_i32, %c0_i32_0 : i32, i32
  }
  func.func @transform_7(%arg0: i32) -> (i32, i32) {
    %c0_i32 = arith.constant 0 : i32
    %c0_i32_0 = arith.constant 0 : i32
    %c0_i32_1 = arith.constant 0 : i32
    return %c0_i32, %c0_i32_0 : i32, i32
  }
  func.func @transform_8(%arg0: i32) -> (i32, i32) {
    %c0_i32 = arith.constant 0 : i32
    %c0_i32_0 = arith.constant 0 : i32
    %c0_i32_1 = arith.constant 0 : i32
    return %c0_i32, %c0_i32_0 : i32, i32
  }
  func.func @transform_9(%arg0: i32) -> (i32, i32) {
    %c0_i32 = arith.constant 0 : i32
    %c0_i32_0 = arith.constant 0 : i32
    return %arg0, %c0_i32 : i32, i32
  }
}

</mosaic_0001>

<llo_original>
// kernel: tpu_custom_call.1
$region0: #{tpu_custom_call.1}
  #allocation0 [shape = 'u32[]', space=smem, size = 0x4, offset = 0x4, fixed_abs, tag = 'smem constant byte address 0x4 - core index']
  #allocation1 [shape = 'u32[144,128]{1,0:T(1,128)}', space=vmem, size = 0x12000, scoped, tag = 'internal scratch']
  %s0 = inlined_call_operand.vmem [shape: f32[256,32], index: 0, kind: input, shape index: {}]
  %s1 = inlined_call_operand.vmem [shape: bf16[32,256], index: 1, kind: input, shape index: {}]
  %s2 = inlined_call_operand.vmem [shape: f32[1,256], index: 2, kind: input, shape index: {}]
  %s3 = inlined_call_operand.vmem [shape: bf16[256,128], index: 3, kind: input, shape index: {}]
  %s4 = inlined_call_operand.vmem [shape: f32[1,128], index: 4, kind: input, shape index: {}]
  %s5 = inlined_call_operand.vmem [shape: bf16[128,128], index: 5, kind: input, shape index: {}]
  %s6 = inlined_call_operand.vmem [shape: f32[1,128], index: 6, kind: input, shape index: {}]
  %s7 = inlined_call_operand.vmem [shape: bf16[128,128], index: 7, kind: input, shape index: {}]
  %s8 = inlined_call_operand.vmem [shape: f32[1,128], index: 8, kind: input, shape index: {}]
  %s9 = inlined_call_operand.hbm [shape: bf16[256,128], index: 9, kind: output, shape index: {}]
  %s10 = sld [smem:[#allocation0]]
  $region46: #{tpu_custom_call.1} parent=0
    _
  %s12 = ssub.s32 1, %s10
  %s13 = scalar_select 0, %s12, %s10
  $region1: #{tpu_custom_call.1} parent=0
    #allocation2 [shape = 'u8[65536]{0}', space=vmem, size = 0x10000, scoped, tag = 'output window, operand 0, single buffered']
    #allocation3 [shape = 's32[1]{0}', space=sflag, size = 0x4, scoped, tag = 'scoped memory for tpu_custom_call.1']
    %14 = vsyncpa [#allocation3], 0
    // Predicated region
    $region2: #{tpu_custom_call.1} parent=1 // pred_check
      _
    $region3: #{tpu_custom_call.1} parent=1 // pred_check_branch
      %16 = sbr.rel (0) target = $region5
    $region4: #{tpu_custom_call.1} parent=1 // pred_region
      _
    $region5: #{tpu_custom_call.1} parent=1 // pred_fallthru
      _
    // Predicated region
    $region6: #{tpu_custom_call.1} parent=1 // pred_check
      _
    $region7: #{tpu_custom_call.1} parent=1 // pred_check_branch
      %18 = sbr.rel (0) target = $region9
    $region8: #{tpu_custom_call.1} parent=1 // pred_region
      _
    $region9: #{tpu_custom_call.1} parent=1 // pred_fallthru
      _
    // Predicated region
    $region10: #{tpu_custom_call.1} parent=1 // pred_check
      _
    $region11: #{tpu_custom_call.1} parent=1 // pred_check_branch
      %20 = sbr.rel (0) target = $region13
    $region12: #{tpu_custom_call.1} parent=1 // pred_region
      _
    $region13: #{tpu_custom_call.1} parent=1 // pred_fallthru
      _
    // Predicated region
    $region14: #{tpu_custom_call.1} parent=1 // pred_check
      _
    $region15: #{tpu_custom_call.1} parent=1 // pred_check_branch
      %22 = sbr.rel (0) target = $region17
    $region16: #{tpu_custom_call.1} parent=1 // pred_region
      _
    $region17: #{tpu_custom_call.1} parent=1 // pred_fallthru
      _
    // Predicated region
    $region18: #{tpu_custom_call.1} parent=1 // pred_check
      _
    $region19: #{tpu_custom_call.1} parent=1 // pred_check_branch
      %24 = sbr.rel (0) target = $region21
    $region20: #{tpu_custom_call.1} parent=1 // pred_region
      _
    $region21: #{tpu_custom_call.1} parent=1 // pred_fallthru
      _
    // Predicated region
    $region22: #{tpu_custom_call.1} parent=1 // pred_check
      _
    $region23: #{tpu_custom_call.1} parent=1 // pred_check_branch
      %26 = sbr.rel (0) target = $region25
    $region24: #{tpu_custom_call.1} parent=1 // pred_region
      _
    $region25: #{tpu_custom_call.1} parent=1 // pred_fallthru
      _
    // Predicated region
    $region26: #{tpu_custom_call.1} parent=1 // pred_check
      _
    $region27: #{tpu_custom_call.1} parent=1 // pred_check_branch
      %28 = sbr.rel (0) target = $region29
    $region28: #{tpu_custom_call.1} parent=1 // pred_region
      _
    $region29: #{tpu_custom_call.1} parent=1 // pred_fallthru
      _
    // Predicated region
    $region30: #{tpu_custom_call.1} parent=1 // pred_check
      _
    $region31: #{tpu_custom_call.1} parent=1 // pred_check_branch
      %30 = sbr.rel (0) target = $region33
    $region32: #{tpu_custom_call.1} parent=1 // pred_region
      _
    $region33: #{tpu_custom_call.1} parent=1 // pred_fallthru
      _
    // Predicated region
    $region34: #{tpu_custom_call.1} parent=1 // pred_check
      _
    $region35: #{tpu_custom_call.1} parent=1 // pred_check_branch
      %32 = sbr.rel (0) target = $region37
    $region36: #{tpu_custom_call.1} parent=1 // pred_region
      _
    $region37: #{tpu_custom_call.1} parent=1 // pred_fallthru
      _
    %v34 = vld [vmem:[%s0] sm:$0xff]
    %v35 = vld [vmem:[%s0 + $0x8] sm:$0xff]
    %v36 = vld [vmem:[%s0 + $0x10] sm:$0xff]
    %v37 = vld [vmem:[%s0 + $0x18] sm:$0xff]
    %v38 = vld [vmem:[%s0 + $0x20] sm:$0xff]
    %v39 = vld [vmem:[%s0 + $0x28] sm:$0xff]
    %v40 = vld [vmem:[%s0 + $0x30] sm:$0xff]
    %v41 = vld [vmem:[%s0 + $0x38] sm:$0xff]
    %v42 = vld [vmem:[%s0 + $0x40] sm:$0xff]
    %v43 = vld [vmem:[%s0 + $0x48] sm:$0xff]
    %v44 = vld [vmem:[%s0 + $0x50] sm:$0xff]
    %v45 = vld [vmem:[%s0 + $0x58] sm:$0xff]
    %v46 = vld [vmem:[%s0 + $0x60] sm:$0xff]
    %v47 = vld [vmem:[%s0 + $0x68] sm:$0xff]
    %v48 = vld [vmem:[%s0 + $0x70] sm:$0xff]
    %v49 = vld [vmem:[%s0 + $0x78] sm:$0xff]
    %v50 = vld [vmem:[%s0 + $0x80] sm:$0xff]
    %v51 = vld [vmem:[%s0 + $0x88] sm:$0xff]
    %v52 = vld [vmem:[%s0 + $0x90] sm:$0xff]
    %v53 = vld [vmem:[%s0 + $0x98] sm:$0xff]
    %v54 = vld [vmem:[%s0 + $0xa0] sm:$0xff]
    %v55 = vld [vmem:[%s0 + $0xa8] sm:$0xff]
    %v56 = vld [vmem:[%s0 + $0xb0] sm:$0xff]
    %v57 = vld [vmem:[%s0 + $0xb8] sm:$0xff]
    %v58 = vld [vmem:[%s0 + $0xc0] sm:$0xff]
    %v59 = vld [vmem:[%s0 + $0xc8] sm:$0xff]
    %v60 = vld [vmem:[%s0 + $0xd0] sm:$0xff]
    %v61 = vld [vmem:[%s0 + $0xd8] sm:$0xff]
    %v62 = vld [vmem:[%s0 + $0xe0] sm:$0xff]
    %v63 = vld [vmem:[%s0 + $0xe8] sm:$0xff]
    %v64 = vld [vmem:[%s0 + $0xf0] sm:$0xff]
    %v65 = vld [vmem:[%s0 + $0xf8] sm:$0xff]
    %v66 = vpack.c.bf16 %v35, %v34
    %v67 = vpack.c.bf16 %v37, %v36
    %v68 = vpack.c.bf16 %v39, %v38
    %v69 = vpack.c.bf16 %v41, %v40
    %v70 = vpack.c.bf16 %v43, %v42
    %v71 = vpack.c.bf16 %v45, %v44
    %v72 = vpack.c.bf16 %v47, %v46
    %v73 = vpack.c.bf16 %v49, %v48
    %v74 = vpack.c.bf16 %v51, %v50
    %v75 = vpack.c.bf16 %v53, %v52
    %v76 = vpack.c.bf16 %v55, %v54
    %v77 = vpack.c.bf16 %v57, %v56
    %v78 = vpack.c.bf16 %v59, %v58
    %v79 = vpack.c.bf16 %v61, %v60
    %v80 = vpack.c.bf16 %v63, %v62
    %v81 = vpack.c.bf16 %v65, %v64
    %v82 = vld [vmem:[%s1] sm:$0xff]
    %v83 = vld [vmem:[%s1 + $0x8] sm:$0xff]
    %v84 = vld [vmem:[%s1 + $0x10] sm:$0xff]
    %v85 = vld [vmem:[%s1 + $0x18] sm:$0xff]
    %v86 = vld [vmem:[%s2] sm:$0x3]
    %v88 = vlaneseq
    %v89 = vshrl.u32 %v88, 7
    %v90 = vsub.s32 0, %v89
    %v91 = vrot.slane %v86, %v90
    %v92 = vlaneseq
    %v93 = vshrl.u32 %v92, 7
    %v94 = vsub.s32 1, %v93
    %v95 = vrot.slane %v86, %v94
    %v102 = vunpack.c.l.b16 %v82
    %v103 = vunpack.c.h.b16 %v82
    %v104 = vunpack.c.l.b16 %v83
    %v105 = vunpack.c.h.b16 %v83
    %v106 = vunpack.c.l.b16 %v84
    %v107 = vunpack.c.h.b16 %v84
    %v108 = vunpack.c.l.b16 %v85
    %v109 = vunpack.c.h.b16 %v85
    %v110 = vpack.c.b16 %v104, %v102
    %v111 = vpack.c.b16 %v105, %v103
    %v112 = vpack.c.b16 %v108, %v106
    %v113 = vpack.c.b16 %v109, %v107
    %vm118 = vcmask 261120
    %v120 = vsel %vm118, %v66, 0
    %v123 = vsel %vm118, %v67, 0
    %v126 = vsel %vm118, %v68, 0
    %v129 = vsel %vm118, %v69, 0
    %v132 = vsel %vm118, %v70, 0
    %v135 = vsel %vm118, %v71, 0
    %v138 = vsel %vm118, %v72, 0
    %v141 = vsel %vm118, %v73, 0
    %v144 = vsel %vm118, %v74, 0
    %v147 = vsel %vm118, %v75, 0
    %v150 = vsel %vm118, %v76, 0
    %v153 = vsel %vm118, %v77, 0
    %v156 = vsel %vm118, %v78, 0
    %v159 = vsel %vm118, %v79, 0
    %v162 = vsel %vm118, %v80, 0
    %v165 = vsel %vm118, %v81, 0
    %167 = vmatprep.subr.bf16.mxu0 %v111
    %168 = vmatpush1.bf16.msra.mxu0 %v110
    %169 = vmatprep.subr.bf16.mxu0 %v113
    %170 = vmatpush1.bf16.msra.mxu0 %v112
    %171 = vmatprep.subr.bf16.mxu0 0
    %172 = vmatpush1.bf16.msra.mxu0 0
    %173 = vmatprep.subr.bf16.mxu0 0
    %174 = vmatpush1.bf16.msra.mxu0 0
    %175 = vmatprep.subr.bf16.mxu0 0
    %176 = vmatpush1.bf16.msra.mxu0 0
    %177 = vmatprep.subr.bf16.mxu0 0
    %178 = vmatpush1.bf16.msra.mxu0 0
    %179 = vmatprep.subr.bf16.mxu0 0
    %180 = vmatpush1.bf16.msra.mxu0 0
    %181 = vmatprep.subr.bf16.mxu0 0
    %182 = vmatpush1.bf16.msra.mxu0 0
    %183 = vmatprep.subr.bf16.mxu0 0
    %184 = vmatpush1.bf16.msra.mxu0 0
    %185 = vmatprep.subr.bf16.mxu0 0
    %186 = vmatpush1.bf16.msra.mxu0 0
    %187 = vmatprep.subr.bf16.mxu0 0
    %188 = vmatpush1.bf16.msra.mxu0 0
    %189 = vmatprep.subr.bf16.mxu0 0
    %190 = vmatpush1.bf16.msra.mxu0 0
    %191 = vmatprep.subr.bf16.mxu0 0
    %192 = vmatpush1.bf16.msra.mxu0 0
    %193 = vmatprep.subr.bf16.mxu0 0
    %194 = vmatpush1.bf16.msra.mxu0 0
    %195 = vmatprep.subr.bf16.mxu0 0
    %196 = vmatpush1.bf16.msra.mxu0 0
    %197 = vmatprep.subr.bf16.mxu0 0
    %198 = vmatpush1.bf16.msra.mxu0 0
    %199 = vmatprep.mubr.bf16.mxu0 0
    %200 = vmatmul.mubr.bf16.gmra.mrb[0].mxu0 %v120
    %v201 = vpop.f32.mrb[0].mxu0
    %v202 = vadd.f32 %v91, %v201
    %v203 = vpop.f32.mrb[0].mxu0
    %v204 = vadd.f32 %v95, %v203
    %v205 = vpop.f32.mrb[0].mxu0
    %v206 = vadd.f32 %v91, %v205
    %v207 = vpop.f32.mrb[0].mxu0
    %v208 = vadd.f32 %v95, %v207
    %209 = vmatprep.mubr.bf16.mxu0 0
    %210 = vmatmul.mubr.bf16.gmra.mrb[0].mxu0 %v123
    %v211 = vpop.f32.mrb[0].mxu0
    %v212 = vadd.f32 %v91, %v211
    %v213 = vpop.f32.mrb[0].mxu0
    %v214 = vadd.f32 %v95, %v213
    %v215 = vpop.f32.mrb[0].mxu0
    %v216 = vadd.f32 %v91, %v215
    %v217 = vpop.f32.mrb[0].mxu0
    %v218 = vadd.f32 %v95, %v217
    %219 = vmatprep.mubr.bf16.mxu0 0
    %220 = vmatmul.mubr.bf16.gmra.mrb[0].mxu0 %v126
    %v221 = vpop.f32.mrb[0].mxu0
    %v222 = vadd.f32 %v91, %v221
    %v223 = vpop.f32.mrb[0].mxu0
    %v224 = vadd.f32 %v95, %v223
    %v225 = vpop.f32.mrb[0].mxu0
    %v226 = vadd.f32 %v91, %v225
    %v227 = vpop.f32.mrb[0].mxu0
    %v228 = vadd.f32 %v95, %v227
    %229 = vmatprep.mubr.bf16.mxu0 0
    %230 = vmatmul.mubr.bf16.gmra.mrb[0].mxu0 %v129
    %v231 = vpop.f32.mrb[0].mxu0
    %v232 = vadd.f32 %v91, %v231
    %v233 = vpop.f32.mrb[0].mxu0
    %v234 = vadd.f32 %v95, %v233
    %v235 = vpop.f32.mrb[0].mxu0
    %v236 = vadd.f32 %v91, %v235
    %v237 = vpop.f32.mrb[0].mxu0
    %v238 = vadd.f32 %v95, %v237
    %239 = vmatprep.mubr.bf16.mxu0 0
    %240 = vmatmul.mubr.bf16.gmra.mrb[0].mxu0 %v132
    %v241 = vpop.f32.mrb[0].mxu0
    %v242 = vadd.f32 %v91, %v241
    %v243 = vpop.f32.mrb[0].mxu0
    %v244 = vadd.f32 %v95, %v243
    %v245 = vpop.f32.mrb[0].mxu0
    %v246 = vadd.f32 %v91, %v245
    %v247 = vpop.f32.mrb[0].mxu0
    %v248 = vadd.f32 %v95, %v247
    %249 = vmatprep.mubr.bf16.mxu0 0
    %250 = vmatmul.mubr.bf16.gmra.mrb[0].mxu0 %v135
    %v251 = vpop.f32.mrb[0].mxu0
    %v252 = vadd.f32 %v91, %v251
    %v253 = vpop.f32.mrb[0].mxu0
    %v254 = vadd.f32 %v95, %v253
    %v255 = vpop.f32.mrb[0].mxu0
    %v256 = vadd.f32 %v91, %v255
    %v257 = vpop.f32.mrb[0].mxu0
    %v258 = vadd.f32 %v95, %v257
    %259 = vmatprep.mubr.bf16.mxu0 0
    %260 = vmatmul.mubr.bf16.gmra.mrb[0].mxu0 %v138
    %v261 = vpop.f32.mrb[0].mxu0
    %v262 = vadd.f32 %v91, %v261
    %v263 = vpop.f32.mrb[0].mxu0
    %v264 = vadd.f32 %v95, %v263
    %v265 = vpop.f32.mrb[0].mxu0
    %v266 = vadd.f32 %v91, %v265
    %v267 = vpop.f32.mrb[0].mxu0
    %v268 = vadd.f32 %v95, %v267
    %269 = vmatprep.mubr.bf16.mxu0 0
    %270 = vmatmul.mubr.bf16.gmra.mrb[0].mxu0 %v141
    %v271 = vpop.f32.mrb[0].mxu0
    %v272 = vadd.f32 %v91, %v271
    %v273 = vpop.f32.mrb[0].mxu0
    %v274 = vadd.f32 %v95, %v273
    %v275 = vpop.f32.mrb[0].mxu0
    %v276 = vadd.f32 %v91, %v275
    %v277 = vpop.f32.mrb[0].mxu0
    %v278 = vadd.f32 %v95, %v277
    %279 = vmatprep.mubr.bf16.mxu0 0
    %280 = vmatmul.mubr.bf16.gmra.mrb[0].mxu0 %v144
    %v281 = vpop.f32.mrb[0].mxu0
    %v282 = vadd.f32 %v91, %v281
    %v283 = vpop.f32.mrb[0].mxu0
    %v284 = vadd.f32 %v95, %v283
    %v285 = vpop.f32.mrb[0].mxu0
    %v286 = vadd.f32 %v91, %v285
    %v287 = vpop.f32.mrb[0].mxu0
    %v288 = vadd.f32 %v95, %v287
    %289 = vmatprep.mubr.bf16.mxu0 0
    %290 = vmatmul.mubr.bf16.gmra.mrb[0].mxu0 %v147
    %v291 = vpop.f32.mrb[0].mxu0
    %v292 = vadd.f32 %v91, %v291
    %v293 = vpop.f32.mrb[0].mxu0
    %v294 = vadd.f32 %v95, %v293
    %v295 = vpop.f32.mrb[0].mxu0
    %v296 = vadd.f32 %v91, %v295
    %v297 = vpop.f32.mrb[0].mxu0
    %v298 = vadd.f32 %v95, %v297
    %299 = vmatprep.mubr.bf16.mxu0 0
    %300 = vmatmul.mubr.bf16.gmra.mrb[0].mxu0 %v150
    %v301 = vpop.f32.mrb[0].mxu0
    %v302 = vadd.f32 %v91, %v301
    %v303 = vpop.f32.mrb[0].mxu0
    %v304 = vadd.f32 %v95, %v303
    %v305 = vpop.f32.mrb[0].mxu0
    %v306 = vadd.f32 %v91, %v305
    %v307 = vpop.f32.mrb[0].mxu0
    %v308 = vadd.f32 %v95, %v307
    %309 = vmatprep.mubr.bf16.mxu0 0
    %310 = vmatmul.mubr.bf16.gmra.mrb[0].mxu0 %v153
    %v311 = vpop.f32.mrb[0].mxu0
    %v312 = vadd.f32 %v91, %v311
    %v313 = vpop.f32.mrb[0].mxu0
    %v314 = vadd.f32 %v95, %v313
    %v315 = vpop.f32.mrb[0].mxu0
    %v316 = vadd.f32 %v91, %v315
    %v317 = vpop.f32.mrb[0].mxu0
    %v318 = vadd.f32 %v95, %v317
    %319 = vmatprep.mubr.bf16.mxu0 0
    %320 = vmatmul.mubr.bf16.gmra.mrb[0].mxu0 %v156
    %v321 = vpop.f32.mrb[0].mxu0
    %v322 = vadd.f32 %v91, %v321
    %v323 = vpop.f32.mrb[0].mxu0
    %v324 = vadd.f32 %v95, %v323
    %v325 = vpop.f32.mrb[0].mxu0
    %v326 = vadd.f32 %v91, %v325
    %v327 = vpop.f32.mrb[0].mxu0
    %v328 = vadd.f32 %v95, %v327
    %329 = vmatprep.mubr.bf16.mxu0 0
    %330 = vmatmul.mubr.bf16.gmra.mrb[0].mxu0 %v159
    %v331 = vpop.f32.mrb[0].mxu0
    %v332 = vadd.f32 %v91, %v331
    %v333 = vpop.f32.mrb[0].mxu0
    %v334 = vadd.f32 %v95, %v333
    %v335 = vpop.f32.mrb[0].mxu0
    %v336 = vadd.f32 %v91, %v335
    %v337 = vpop.f32.mrb[0].mxu0
    %v338 = vadd.f32 %v95, %v337
    %339 = vmatprep.mubr.bf16.mxu0 0
    %340 = vmatmul.mubr.bf16.gmra.mrb[0].mxu0 %v162
    %v341 = vpop.f32.mrb[0].mxu0
    %v342 = vadd.f32 %v91, %v341
    %v343 = vpop.f32.mrb[0].mxu0
    %v344 = vadd.f32 %v95, %v343
    %v345 = vpop.f32.mrb[0].mxu0
    %v346 = vadd.f32 %v91, %v345
    %v347 = vpop.f32.mrb[0].mxu0
    %v348 = vadd.f32 %v95, %v347
    %349 = vmatprep.mubr.bf16.mxu0 0
    %350 = vmatmul.mubr.bf16.gmra.mrb[0].mxu0 %v165
    %v351 = vpop.f32.mrb[0].mxu0
    %v352 = vadd.f32 %v91, %v351
    %v353 = vpop.f32.mrb[0].mxu0
    %v354 = vadd.f32 %v95, %v353
    %v355 = vpop.f32.mrb[0].mxu0
    %v356 = vadd.f32 %v91, %v355
    %v357 = vpop.f32.mrb[0].mxu0
    %v358 = vadd.f32 %v95, %v357
    %359 = vdwg.mxu0
    %v360 = vmul.f32 %v202, 0.1
    %v361 = vmul.f32 %v204, 0.1
    %v362 = vmul.f32 %v206, 0.1
    %v363 = vmul.f32 %v208, 0.1
    %v364 = vmul.f32 %v212, 0.1
    %v365 = vmul.f32 %v214, 0.1
    %v366 = vmul.f32 %v216, 0.1
    %v367 = vmul.f32 %v218, 0.1
    %v368 = vmul.f32 %v222, 0.1
    %v369 = vmul.f32 %v224, 0.1
    %v370 = vmul.f32 %v226, 0.1
    %v371 = vmul.f32 %v228, 0.1
    %v372 = vmul.f32 %v232, 0.1
    %v373 = vmul.f32 %v234, 0.1
    %v374 = vmul.f32 %v236, 0.1
    %v375 = vmul.f32 %v238, 0.1
    %v376 = vmul.f32 %v242, 0.1
    %v377 = vmul.f32 %v244, 0.1
    %v378 = vmul.f32 %v246, 0.1
    %v379 = vmul.f32 %v248, 0.1
    %v380 = vmul.f32 %v252, 0.1
    %v381 = vmul.f32 %v254, 0.1
    %v382 = vmul.f32 %v256, 0.1
    %v383 = vmul.f32 %v258, 0.1
    %v384 = vmul.f32 %v262, 0.1
    %v385 = vmul.f32 %v264, 0.1
    %v386 = vmul.f32 %v266, 0.1
    %v387 = vmul.f32 %v268, 0.1
    %v388 = vmul.f32 %v272, 0.1
    %v389 = vmul.f32 %v274, 0.1
    %v390 = vmul.f32 %v276, 0.1
    %v391 = vmul.f32 %v278, 0.1
    %v392 = vmul.f32 %v282, 0.1
    %v393 = vmul.f32 %v284, 0.1
    %v394 = vmul.f32 %v286, 0.1
    %v395 = vmul.f32 %v288, 0.1
    %v396 = vmul.f32 %v292, 0.1
    %v397 = vmul.f32 %v294, 0.1
    %v398 = vmul.f32 %v296, 0.1
    %v399 = vmul.f32 %v298, 0.1
    %v400 = vmul.f32 %v302, 0.1
    %v401 = vmul.f32 %v304, 0.1
    %v402 = vmul.f32 %v306, 0.1
    %v403 = vmul.f32 %v308, 0.1
    %v404 = vmul.f32 %v312, 0.1
    %v405 = vmul.f32 %v314, 0.1
    %v406 = vmul.f32 %v316, 0.1
    %v407 = vmul.f32 %v318, 0.1
    %v408 = vmul.f32 %v322, 0.1
    %v409 = vmul.f32 %v324, 0.1
    %v410 = vmul.f32 %v326, 0.1
    %v411 = vmul.f32 %v328, 0.1
    %v412 = vmul.f32 %v332, 0.1
    %v413 = vmul.f32 %v334, 0.1
    %v414 = vmul.f32 %v336, 0.1
    %v415 = vmul.f32 %v338, 0.1
    %v416 = vmul.f32 %v342, 0.1
    %v417 = vmul.f32 %v344, 0.1
    %v418 = vmul.f32 %v346, 0.1
    %v419 = vmul.f32 %v348, 0.1
    %v420 = vmul.f32 %v352, 0.1
    %v421 = vmul.f32 %v354, 0.1
    %v422 = vmul.f32 %v356, 0.1
    %v423 = vmul.f32 %v358, 0.1
    %v424 = vmax.f32 %v202, %v360
    %v425 = vmax.f32 %v204, %v361
    %v426 = vmax.f32 %v206, %v362
    %v427 = vmax.f32 %v208, %v363
    %v428 = vmax.f32 %v212, %v364
    %v429 = vmax.f32 %v214, %v365
    %v430 = vmax.f32 %v216, %v366
    %v431 = vmax.f32 %v218, %v367
    %v432 = vmax.f32 %v222, %v368
    %v433 = vmax.f32 %v224, %v369
    %v434 = vmax.f32 %v226, %v370
    %v435 = vmax.f32 %v228, %v371
    %v436 = vmax.f32 %v232, %v372
    %v437 = vmax.f32 %v234, %v373
    %v438 = vmax.f32 %v236, %v374
    %v439 = vmax.f32 %v238, %v375
    %v440 = vmax.f32 %v242, %v376
    %v441 = vmax.f32 %v244, %v377
    %v442 = vmax.f32 %v246, %v378
    %v443 = vmax.f32 %v248, %v379
    %v444 = vmax.f32 %v252, %v380
    %v445 = vmax.f32 %v254, %v381
    %v446 = vmax.f32 %v256, %v382
    %v447 = vmax.f32 %v258, %v383
    %v448 = vmax.f32 %v262, %v384
    %v449 = vmax.f32 %v264, %v385
    %v450 = vmax.f32 %v266, %v386
    %v451 = vmax.f32 %v268, %v387
    %v452 = vmax.f32 %v272, %v388
    %v453 = vmax.f32 %v274, %v389
    %v454 = vmax.f32 %v276, %v390
    %v455 = vmax.f32 %v278, %v391
    %v456 = vmax.f32 %v282, %v392
    %v457 = vmax.f32 %v284, %v393
    %v458 = vmax.f32 %v286, %v394
    %v459 = vmax.f32 %v288, %v395
    %v460 = vmax.f32 %v292, %v396
    %v461 = vmax.f32 %v294, %v397
    %v462 = vmax.f32 %v296, %v398
    %v463 = vmax.f32 %v298, %v399
    %v464 = vmax.f32 %v302, %v400
    %v465 = vmax.f32 %v304, %v401
    %v466 = vmax.f32 %v306, %v402
    %v467 = vmax.f32 %v308, %v403
    %v468 = vmax.f32 %v312, %v404
    %v469 = vmax.f32 %v314, %v405
    %v470 = vmax.f32 %v316, %v406
    %v471 = vmax.f32 %v318, %v407
    %v472 = vmax.f32 %v322, %v408
    %v473 = vmax.f32 %v324, %v409
    %v474 = vmax.f32 %v326, %v410
    %v475 = vmax.f32 %v328, %v411
    %v476 = vmax.f32 %v332, %v412
    %v477 = vmax.f32 %v334, %v413
    %v478 = vmax.f32 %v336, %v414
    %v479 = vmax.f32 %v338, %v415
    %v480 = vmax.f32 %v342, %v416
    %v481 = vmax.f32 %v344, %v417
    %v482 = vmax.f32 %v346, %v418
    %v483 = vmax.f32 %v348, %v419
    %v484 = vmax.f32 %v352, %v420
    %v485 = vmax.f32 %v354, %v421
    %v486 = vmax.f32 %v356, %v422
    %v487 = vmax.f32 %v358, %v423
    %v488 = vpack.c.bf16 %v426, %v424
    %v489 = vpack.c.bf16 %v427, %v425
    %v490 = vpack.c.bf16 %v430, %v428
    %v491 = vpack.c.bf16 %v431, %v429
    %v492 = vpack.c.bf16 %v434, %v432
    %v493 = vpack.c.bf16 %v435, %v433
    %v494 = vpack.c.bf16 %v438, %v436
    %v495 = vpack.c.bf16 %v439, %v437
    %v496 = vpack.c.bf16 %v442, %v440
    %v497 = vpack.c.bf16 %v443, %v441
    %v498 = vpack.c.bf16 %v446, %v444
    %v499 = vpack.c.bf16 %v447, %v445
    %v500 = vpack.c.bf16 %v450, %v448
    %v501 = vpack.c.bf16 %v451, %v449
    %v502 = vpack.c.bf16 %v454, %v452
    %v503 = vpack.c.bf16 %v455, %v453
    %v504 = vpack.c.bf16 %v458, %v456
    %v505 = vpack.c.bf16 %v459, %v457
    %v506 = vpack.c.bf16 %v462, %v460
    %v507 = vpack.c.bf16 %v463, %v461
    %v508 = vpack.c.bf16 %v466, %v464
    %v509 = vpack.c.bf16 %v467, %v465
    %v510 = vpack.c.bf16 %v470, %v468
    %v511 = vpack.c.bf16 %v471, %v469
    %v512 = vpack.c.bf16 %v474, %v472
    %v513 = vpack.c.bf16 %v475, %v473
    %v514 = vpack.c.bf16 %v478, %v476
    %v515 = vpack.c.bf16 %v479, %v477
    %v516 = vpack.c.bf16 %v482, %v480
    %v517 = vpack.c.bf16 %v483, %v481
    %v518 = vpack.c.bf16 %v486, %v484
    %v519 = vpack.c.bf16 %v487, %v485
    %v520 = vld [vmem:[%s3] sm:$0xf]
    %v521 = vld [vmem:[%s3 + $0x4] sm:$0xf]
    %v522 = vld [vmem:[%s3 + $0x8] sm:$0xf]
    %v523 = vld [vmem:[%s3 + $0xc] sm:$0xf]
    %v524 = vld [vmem:[%s3 + $0x10] sm:$0xf]
    %v525 = vld [vmem:[%s3 + $0x14] sm:$0xf]
    %v526 = vld [vmem:[%s3 + $0x18] sm:$0xf]
    %v527 = vld [vmem:[%s3 + $0x1c] sm:$0xf]
    %v528 = vld [vmem:[%s3 + $0x20] sm:$0xf]
    %v529 = vld [vmem:[%s3 + $0x24] sm:$0xf]
    %v530 = vld [vmem:[%s3 + $0x28] sm:$0xf]
    %v531 = vld [vmem:[%s3 + $0x2c] sm:$0xf]
    %v532 = vld [vmem:[%s3 + $0x30] sm:$0xf]
    %v533 = vld [vmem:[%s3 + $0x34] sm:$0xf]
    %v534 = vld [vmem:[%s3 + $0x38] sm:$0xf]
    %v535 = vld [vmem:[%s3 + $0x3c] sm:$0xf]
    %v536 = vld [vmem:[%s3 + $0x40] sm:$0xf]
    %v537 = vld [vmem:[%s3 + $0x44] sm:$0xf]
    %v538 = vld [vmem:[%s3 + $0x48] sm:$0xf]
    %v539 = vld [vmem:[%s3 + $0x4c] sm:$0xf]
    %v540 = vld [vmem:[%s3 + $0x50] sm:$0xf]
    %v541 = vld [vmem:[%s3 + $0x54] sm:$0xf]
    %v542 = vld [vmem:[%s3 + $0x58] sm:$0xf]
    %v543 = vld [vmem:[%s3 + $0x5c] sm:$0xf]
    %v544 = vld [vmem:[%s3 + $0x60] sm:$0xf]
    %v545 = vld [vmem:[%s3 + $0x64] sm:$0xf]
    %v546 = vld [vmem:[%s3 + $0x68] sm:$0xf]
    %v547 = vld [vmem:[%s3 + $0x6c] sm:$0xf]
    %v548 = vld [vmem:[%s3 + $0x70] sm:$0xf]
    %v549 = vld [vmem:[%s3 + $0x74] sm:$0xf]
    %v550 = vld [vmem:[%s3 + $0x78] sm:$0xf]
    %v551 = vld [vmem:[%s3 + $0x7c] sm:$0xf]
    %v552 = vld [vmem:[%s4] sm:$0x1]
    %v554 = vlaneseq
    %v555 = vshrl.u32 %v554, 7
    %v556 = vsub.s32 0, %v555
    %v557 = vrot.slane %v552, %v556
    %v591 = vunpack.c.l.b16 %v520
    %v592 = vunpack.c.l.b16 %v521
    %v593 = vunpack.c.l.b16 %v522
    %v594 = vunpack.c.l.b16 %v523
    %v595 = vunpack.c.l.b16 %v524
    %v596 = vunpack.c.l.b16 %v525
    %v597 = vunpack.c.l.b16 %v526
    %v598 = vunpack.c.l.b16 %v527
    %v599 = vunpack.c.l.b16 %v528
    %v600 = vunpack.c.l.b16 %v529
    %v601 = vunpack.c.l.b16 %v530
    %v602 = vunpack.c.l.b16 %v531
    %v603 = vunpack.c.l.b16 %v532
    %v604 = vunpack.c.l.b16 %v533
    %v605 = vunpack.c.l.b16 %v534
    %v606 = vunpack.c.l.b16 %v535
    %v607 = vunpack.c.l.b16 %v536
    %v608 = vunpack.c.l.b16 %v537
    %v609 = vunpack.c.l.b16 %v538
    %v610 = vunpack.c.l.b16 %v539
    %v611 = vunpack.c.l.b16 %v540
    %v612 = vunpack.c.l.b16 %v541
    %v613 = vunpack.c.l.b16 %v542
    %v614 = vunpack.c.l.b16 %v543
    %v615 = vunpack.c.l.b16 %v544
    %v616 = vunpack.c.l.b16 %v545
    %v617 = vunpack.c.l.b16 %v546
    %v618 = vunpack.c.l.b16 %v547
    %v619 = vunpack.c.l.b16 %v548
    %v620 = vunpack.c.l.b16 %v549
    %v621 = vunpack.c.l.b16 %v550
    %v622 = vunpack.c.l.b16 %v551
    %v623 = vpack.c.b16 %v592, %v591
    %v624 = vpack.c.b16 %v594, %v593
    %v625 = vpack.c.b16 %v596, %v595
    %v626 = vpack.c.b16 %v598, %v597
    %v627 = vpack.c.b16 %v600, %v599
    %v628 = vpack.c.b16 %v602, %v601
    %v629 = vpack.c.b16 %v604, %v603
    %v630 = vpack.c.b16 %v606, %v605
    %v631 = vpack.c.b16 %v608, %v607
    %v632 = vpack.c.b16 %v610, %v609
    %v633 = vpack.c.b16 %v612, %v611
    %v634 = vpack.c.b16 %v614, %v613
    %v635 = vpack.c.b16 %v616, %v615
    %v636 = vpack.c.b16 %v618, %v617
    %v637 = vpack.c.b16 %v620, %v619
    %v638 = vpack.c.b16 %v622, %v621
    %655 = vmatprep.subr.bf16.mxu0 0
    %656 = vmatpush1.bf16.msra.mxu0 %v623
    %657 = vmatprep.subr.bf16.mxu0 0
    %658 = vmatpush1.bf16.msra.mxu0 %v624
    %659 = vmatprep.subr.bf16.mxu0 0
    %660 = vmatpush1.bf16.msra.mxu0 %v625
    %661 = vmatprep.subr.bf16.mxu0 0
    %662 = vmatpush1.bf16.msra.mxu0 %v626
    %663 = vmatprep.subr.bf16.mxu0 0
    %664 = vmatpush1.bf16.msra.mxu0 %v627
    %665 = vmatprep.subr.bf16.mxu0 0
    %666 = vmatpush1.bf16.msra.mxu0 %v628
    %667 = vmatprep.subr.bf16.mxu0 0
    %668 = vmatpush1.bf16.msra.mxu0 %v629
    %669 = vmatprep.subr.bf16.mxu0 0
    %670 = vmatpush1.bf16.msra.mxu0 %v630
    %671 = vmatprep.subr.bf16.mxu0 0
    %672 = vmatpush1.bf16.msra.mxu0 %v631
    %673 = vmatprep.subr.bf16.mxu0 0
    %674 = vmatpush1.bf16.msra.mxu0 %v632
    %675 = vmatprep.subr.bf16.mxu0 0
    %676 = vmatpush1.bf16.msra.mxu0 %v633
    %677 = vmatprep.subr.bf16.mxu0 0
    %678 = vmatpush1.bf16.msra.mxu0 %v634
    %679 = vmatprep.subr.bf16.mxu0 0
    %680 = vmatpush1.bf16.msra.mxu0 %v635
    %681 = vmatprep.subr.bf16.mxu0 0
    %682 = vmatpush1.bf16.msra.mxu0 %v636
    %683 = vmatprep.subr.bf16.mxu0 0
    %684 = vmatpush1.bf16.msra.mxu0 %v637
    %685 = vmatprep.subr.bf16.mxu0 0
    %686 = vmatpush1.bf16.msra.mxu0 %v638
    %687 = vmatprep.mubr.bf16.mxu0 %v489
    %688 = vmatmul.mubr.bf16.gmra.mrb[0].mxu0 %v488
    %v689 = vpop.f32.mrb[0].mxu0
    %v690 = vadd.f32 %v557, %v689
    %v691 = vpop.f32.mrb[0].mxu0
    %v692 = vpop.f32.mrb[0].mxu0
    %v693 = vadd.f32 %v557, %v692
    %v694 = vpop.f32.mrb[0].mxu0
    %695 = vmatprep.mubr.bf16.mxu0 %v491
    %696 = vmatmul.mubr.bf16.gmra.mrb[0].mxu0 %v490
    %v697 = vpop.f32.mrb[0].mxu0
    %v698 = vadd.f32 %v557, %v697
    %v699 = vpop.f32.mrb[0].mxu0
    %v700 = vpop.f32.mrb[0].mxu0
    %v701 = vadd.f32 %v557, %v700
    %v702 = vpop.f32.mrb[0].mxu0
    %703 = vmatprep.mubr.bf16.mxu0 %v493
    %704 = vmatmul.mubr.bf16.gmra.mrb[0].mxu0 %v492
    %v705 = vpop.f32.mrb[0].mxu0
    %v706 = vadd.f32 %v557, %v705
    %v707 = vpop.f32.mrb[0].mxu0
    %v708 = vpop.f32.mrb[0].mxu0
    %v709 = vadd.f32 %v557, %v708
    %v710 = vpop.f32.mrb[0].mxu0
    %711 = vmatprep.mubr.bf16.mxu0 %v495
    %712 = vmatmul.mubr.bf16.gmra.mrb[0].mxu0 %v494
    %v713 = vpop.f32.mrb[0].mxu0
    %v714 = vadd.f32 %v557, %v713
    %v715 = vpop.f32.mrb[0].mxu0
    %v716 = vpop.f32.mrb[0].mxu0
    %v717 = vadd.f32 %v557, %v716
    %v718 = vpop.f32.mrb[0].mxu0
    %719 = vmatprep.mubr.bf16.mxu0 %v497
    %720 = vmatmul.mubr.bf16.gmra.mrb[0].mxu0 %v496
    %v721 = vpop.f32.mrb[0].mxu0
    %v722 = vadd.f32 %v557, %v721
    %v723 = vpop.f32.mrb[0].mxu0
    %v724 = vpop.f32.mrb[0].mxu0
    %v725 = vadd.f32 %v557, %v724
    %v726 = vpop.f32.mrb[0].mxu0
    %727 = vmatprep.mubr.bf16.mxu0 %v499
    %728 = vmatmul.mubr.bf16.gmra.mrb[0].mxu0 %v498
    %v729 = vpop.f32.mrb[0].mxu0
    %v730 = vadd.f32 %v557, %v729
    %v731 = vpop.f32.mrb[0].mxu0
    %v732 = vpop.f32.mrb[0].mxu0
    %v733 = vadd.f32 %v557, %v732
    %v734 = vpop.f32.mrb[0].mxu0
    %735 = vmatprep.mubr.bf16.mxu0 %v501
    %736 = vmatmul.mubr.bf16.gmra.mrb[0].mxu0 %v500
    %v737 = vpop.f32.mrb[0].mxu0
    %v738 = vadd.f32 %v557, %v737
    %v739 = vpop.f32.mrb[0].mxu0
    %v740 = vpop.f32.mrb[0].mxu0
    %v741 = vadd.f32 %v557, %v740
    %v742 = vpop.f32.mrb[0].mxu0
    %743 = vmatprep.mubr.bf16.mxu0 %v503
    %744 = vmatmul.mubr.bf16.gmra.mrb[0].mxu0 %v502
    %v745 = vpop.f32.mrb[0].mxu0
    %v746 = vadd.f32 %v557, %v745
    %v747 = vpop.f32.mrb[0].mxu0
    %v748 = vpop.f32.mrb[0].mxu0
    %v749 = vadd.f32 %v557, %v748
    %v750 = vpop.f32.mrb[0].mxu0
    %751 = vmatprep.mubr.bf16.mxu0 %v505
    %752 = vmatmul.mubr.bf16.gmra.mrb[0].mxu0 %v504
    %v753 = vpop.f32.mrb[0].mxu0
    %v754 = vadd.f32 %v557, %v753
    %v755 = vpop.f32.mrb[0].mxu0
    %v756 = vpop.f32.mrb[0].mxu0
    %v757 = vadd.f32 %v557, %v756
    %v758 = vpop.f32.mrb[0].mxu0
    %759 = vmatprep.mubr.bf16.mxu0 %v507
    %760 = vmatmul.mubr.bf16.gmra.mrb[0].mxu0 %v506
    %v761 = vpop.f32.mrb[0].mxu0
    %v762 = vadd.f32 %v557, %v761
    %v763 = vpop.f32.mrb[0].mxu0
    %v764 = vpop.f32.mrb[0].mxu0
    %v765 = vadd.f32 %v557, %v764
    %v766 = vpop.f32.mrb[0].mxu0
    %767 = vmatprep.mubr.bf16.mxu0 %v509
    %768 = vmatmul.mubr.bf16.gmra.mrb[0].mxu0 %v508
    %v769 = vpop.f32.mrb[0].mxu0
    %v770 = vadd.f32 %v557, %v769
    %v771 = vpop.f32.mrb[0].mxu0
    %v772 = vpop.f32.mrb[0].mxu0
    %v773 = vadd.f32 %v557, %v772
    %v774 = vpop.f32.mrb[0].mxu0
    %775 = vmatprep.mubr.bf16.mxu0 %v511
    %776 = vmatmul.mubr.bf16.gmra.mrb[0].mxu0 %v510
    %v777 = vpop.f32.mrb[0].mxu0
    %v778 = vadd.f32 %v557, %v777
    %v779 = vpop.f32.mrb[0].mxu0
    %v780 = vpop.f32.mrb[0].mxu0
    %v781 = vadd.f32 %v557, %v780
    %v782 = vpop.f32.mrb[0].mxu0
    %783 = vmatprep.mubr.bf16.mxu0 %v513
    %784 = vmatmul.mubr.bf16.gmra.mrb[0].mxu0 %v512
    %v785 = vpop.f32.mrb[0].mxu0
    %v786 = vadd.f32 %v557, %v785
    %v787 = vpop.f32.mrb[0].mxu0
    %v788 = vpop.f32.mrb[0].mxu0
    %v789 = vadd.f32 %v557, %v788
    %v790 = vpop.f32.mrb[0].mxu0
    %791 = vmatprep.mubr.bf16.mxu0 %v515
    %792 = vmatmul.mubr.bf16.gmra.mrb[0].mxu0 %v514
    %v793 = vpop.f32.mrb[0].mxu0
    %v794 = vadd.f32 %v557, %v793
    %v795 = vpop.f32.mrb[0].mxu0
    %v796 = vpop.f32.mrb[0].mxu0
    %v797 = vadd.f32 %v557, %v796
    %v798 = vpop.f32.mrb[0].mxu0
    %799 = vmatprep.mubr.bf16.mxu0 %v517
    %800 = vmatmul.mubr.bf16.gmra.mrb[0].mxu0 %v516
    %v801 = vpop.f32.mrb[0].mxu0
    %v802 = vadd.f32 %v557, %v801
    %v803 = vpop.f32.mrb[0].mxu0
    %v804 = vpop.f32.mrb[0].mxu0
    %v805 = vadd.f32 %v557, %v804
    %v806 = vpop.f32.mrb[0].mxu0
    %807 = vmatprep.mubr.bf16.mxu0 %v519
    %808 = vmatmul.mubr.bf16.gmra.mrb[0].mxu0 %v518
    %v809 = vpop.f32.mrb[0].mxu0
    %v810 = vadd.f32 %v557, %v809
    %v811 = vpop.f32.mrb[0].mxu0
    %v812 = vpop.f32.mrb[0].mxu0
    %v813 = vadd.f32 %v557, %v812
    %v814 = vpop.f32.mrb[0].mxu0
    %815 = vdwg.mxu0
    %v816 = vmul.f32 %v690, 0.1
    %v817 = vmul.f32 %v693, 0.1
    %v818 = vmul.f32 %v698, 0.1
    %v819 = vmul.f32 %v701, 0.1
    %v820 = vmul.f32 %v706, 0.1
    %v821 = vmul.f32 %v709, 0.1
    %v822 = vmul.f32 %v714, 0.1
    %v823 = vmul.f32 %v717, 0.1
    %v824 = vmul.f32 %v722, 0.1
    %v825 = vmul.f32 %v725, 0.1
    %v826 = vmul.f32 %v730, 0.1
    %v827 = vmul.f32 %v733, 0.1
    %v828 = vmul.f32 %v738, 0.1
    %v829 = vmul.f32 %v741, 0.1
    %v830 = vmul.f32 %v746, 0.1
    %v831 = vmul.f32 %v749, 0.1
    %v832 = vmul.f32 %v754, 0.1
    %v833 = vmul.f32 %v757, 0.1
    %v834 = vmul.f32 %v762, 0.1
    %v835 = vmul.f32 %v765, 0.1
    %v836 = vmul.f32 %v770, 0.1
    %v837 = vmul.f32 %v773, 0.1
    %v838 = vmul.f32 %v778, 0.1
    %v839 = vmul.f32 %v781, 0.1
    %v840 = vmul.f32 %v786, 0.1
    %v841 = vmul.f32 %v789, 0.1
    %v842 = vmul.f32 %v794, 0.1
    %v843 = vmul.f32 %v797, 0.1
    %v844 = vmul.f32 %v802, 0.1
    %v845 = vmul.f32 %v805, 0.1
    %v846 = vmul.f32 %v810, 0.1
    %v847 = vmul.f32 %v813, 0.1
    %v848 = vmax.f32 %v690, %v816
    %v849 = vmax.f32 %v693, %v817
    %v850 = vmax.f32 %v698, %v818
    %v851 = vmax.f32 %v701, %v819
    %v852 = vmax.f32 %v706, %v820
    %v853 = vmax.f32 %v709, %v821
    %v854 = vmax.f32 %v714, %v822
    %v855 = vmax.f32 %v717, %v823
    %v856 = vmax.f32 %v722, %v824
    %v857 = vmax.f32 %v725, %v825
    %v858 = vmax.f32 %v730, %v826
    %v859 = vmax.f32 %v733, %v827
    %v860 = vmax.f32 %v738, %v828
    %v861 = vmax.f32 %v741, %v829
    %v862 = vmax.f32 %v746, %v830
    %v863 = vmax.f32 %v749, %v831
    %v864 = vmax.f32 %v754, %v832
    %v865 = vmax.f32 %v757, %v833
    %v866 = vmax.f32 %v762, %v834
    %v867 = vmax.f32 %v765, %v835
    %v868 = vmax.f32 %v770, %v836
    %v869 = vmax.f32 %v773, %v837
    %v870 = vmax.f32 %v778, %v838
    %v871 = vmax.f32 %v781, %v839
    %v872 = vmax.f32 %v786, %v840
    %v873 = vmax.f32 %v789, %v841
    %v874 = vmax.f32 %v794, %v842
    %v875 = vmax.f32 %v797, %v843
    %v876 = vmax.f32 %v802, %v844
    %v877 = vmax.f32 %v805, %v845
    %v878 = vmax.f32 %v810, %v846
    %v879 = vmax.f32 %v813, %v847
    %v880 = vpack.c.bf16 %v849, %v848
    %v881 = vpack.c.bf16 %v851, %v850
    %v882 = vpack.c.bf16 %v853, %v852
    %v883 = vpack.c.bf16 %v855, %v854
    %v884 = vpack.c.bf16 %v857, %v856
    %v885 = vpack.c.bf16 %v859, %v858
    %v886 = vpack.c.bf16 %v861, %v860
    %v887 = vpack.c.bf16 %v863, %v862
    %v888 = vpack.c.bf16 %v865, %v864
    %v889 = vpack.c.bf16 %v867, %v866
    %v890 = vpack.c.bf16 %v869, %v868
    %v891 = vpack.c.bf16 %v871, %v870
    %v892 = vpack.c.bf16 %v873, %v872
    %v893 = vpack.c.bf16 %v875, %v874
    %v894 = vpack.c.bf16 %v877, %v876
    %v895 = vpack.c.bf16 %v879, %v878
    %v896 = vld [vmem:[%s5] sm:$0xf]
    %v897 = vld [vmem:[%s5 + $0x4] sm:$0xf]
    %v898 = vld [vmem:[%s5 + $0x8] sm:$0xf]
    %v899 = vld [vmem:[%s5 + $0xc] sm:$0xf]
    %v900 = vld [vmem:[%s5 + $0x10] sm:$0xf]
    %v901 = vld [vmem:[%s5 + $0x14] sm:$0xf]
    %v902 = vld [vmem:[%s5 + $0x18] sm:$0xf]
    %v903 = vld [vmem:[%s5 + $0x1c] sm:$0xf]
    %v904 = vld [vmem:[%s5 + $0x20] sm:$0xf]
    %v905 = vld [vmem:[%s5 + $0x24] sm:$0xf]
    %v906 = vld [vmem:[%s5 + $0x28] sm:$0xf]
    %v907 = vld [vmem:[%s5 + $0x2c] sm:$0xf]
    %v908 = vld [vmem:[%s5 + $0x30] sm:$0xf]
    %v909 = vld [vmem:[%s5 + $0x34] sm:$0xf]
    %v910 = vld [vmem:[%s5 + $0x38] sm:$0xf]
    %v911 = vld [vmem:[%s5 + $0x3c] sm:$0xf]
    %v912 = vld [vmem:[%s6] sm:$0x1]
    %v914 = vlaneseq
    %v915 = vshrl.u32 %v914, 7
    %v916 = vsub.s32 0, %v915
    %v917 = vrot.slane %v912, %v916
    %v935 = vunpack.c.l.b16 %v896
    %v936 = vunpack.c.l.b16 %v897
    %v937 = vunpack.c.l.b16 %v898
    %v938 = vunpack.c.l.b16 %v899
    %v939 = vunpack.c.l.b16 %v900
    %v940 = vunpack.c.l.b16 %v901
    %v941 = vunpack.c.l.b16 %v902
    %v942 = vunpack.c.l.b16 %v903
    %v943 = vunpack.c.l.b16 %v904
    %v944 = vunpack.c.l.b16 %v905
    %v945 = vunpack.c.l.b16 %v906
    %v946 = vunpack.c.l.b16 %v907
    %v947 = vunpack.c.l.b16 %v908
    %v948 = vunpack.c.l.b16 %v909
    %v949 = vunpack.c.l.b16 %v910
    %v950 = vunpack.c.l.b16 %v911
    %v951 = vpack.c.b16 %v936, %v935
    %v952 = vpack.c.b16 %v938, %v937
    %v953 = vpack.c.b16 %v940, %v939
    %v954 = vpack.c.b16 %v942, %v941
    %v955 = vpack.c.b16 %v944, %v943
    %v956 = vpack.c.b16 %v946, %v945
    %v957 = vpack.c.b16 %v948, %v947
    %v958 = vpack.c.b16 %v950, %v949
    %967 = vmatprep.subr.bf16.mxu0 0
    %968 = vmatpush1.bf16.msra.mxu0 %v951
    %969 = vmatprep.subr.bf16.mxu0 0
    %970 = vmatpush1.bf16.msra.mxu0 %v952
    %971 = vmatprep.subr.bf16.mxu0 0
    %972 = vmatpush1.bf16.msra.mxu0 %v953
    %973 = vmatprep.subr.bf16.mxu0 0
    %974 = vmatpush1.bf16.msra.mxu0 %v954
    %975 = vmatprep.subr.bf16.mxu0 0
    %976 = vmatpush1.bf16.msra.mxu0 %v955
    %977 = vmatprep.subr.bf16.mxu0 0
    %978 = vmatpush1.bf16.msra.mxu0 %v956
    %979 = vmatprep.subr.bf16.mxu0 0
    %980 = vmatpush1.bf16.msra.mxu0 %v957
    %981 = vmatprep.subr.bf16.mxu0 0
    %982 = vmatpush1.bf16.msra.mxu0 %v958
    %983 = vmatprep.subr.bf16.mxu0 0
    %984 = vmatpush1.bf16.msra.mxu0 0
    %985 = vmatprep.subr.bf16.mxu0 0
    %986 = vmatpush1.bf16.msra.mxu0 0
    %987 = vmatprep.subr.bf16.mxu0 0
    %988 = vmatpush1.bf16.msra.mxu0 0
    %989 = vmatprep.subr.bf16.mxu0 0
    %990 = vmatpush1.bf16.msra.mxu0 0
    %991 = vmatprep.subr.bf16.mxu0 0
    %992 = vmatpush1.bf16.msra.mxu0 0
    %993 = vmatprep.subr.bf16.mxu0 0
    %994 = vmatpush1.bf16.msra.mxu0 0
    %995 = vmatprep.subr.bf16.mxu0 0
    %996 = vmatpush1.bf16.msra.mxu0 0
    %997 = vmatprep.subr.bf16.mxu0 0
    %998 = vmatpush1.bf16.msra.mxu0 0
    %999 = vmatprep.mubr.bf16.mxu0 0
    %1000 = vmatmul.mubr.bf16.gmra.mrb[0].mxu0 %v880
    %v1001 = vpop.f32.mrb[0].mxu0
    %v1002 = vadd.f32 %v917, %v1001
    %v1003 = vpop.f32.mrb[0].mxu0
    %v1004 = vpop.f32.mrb[0].mxu0
    %v1005 = vadd.f32 %v917, %v1004
    %v1006 = vpop.f32.mrb[0].mxu0
    %1007 = vmatprep.mubr.bf16.mxu0 0
    %1008 = vmatmul.mubr.bf16.gmra.mrb[0].mxu0 %v881
    %v1009 = vpop.f32.mrb[0].mxu0
    %v1010 = vadd.f32 %v917, %v1009
    %v1011 = vpop.f32.mrb[0].mxu0
    %v1012 = vpop.f32.mrb[0].mxu0
    %v1013 = vadd.f32 %v917, %v1012
    %v1014 = vpop.f32.mrb[0].mxu0
    %1015 = vmatprep.mubr.bf16.mxu0 0
    %1016 = vmatmul.mubr.bf16.gmra.mrb[0].mxu0 %v882
    %v1017 = vpop.f32.mrb[0].mxu0
    %v1018 = vadd.f32 %v917, %v1017
    %v1019 = vpop.f32.mrb[0].mxu0
    %v1020 = vpop.f32.mrb[0].mxu0
    %v1021 = vadd.f32 %v917, %v1020
    %v1022 = vpop.f32.mrb[0].mxu0
    %1023 = vmatprep.mubr.bf16.mxu0 0
    %1024 = vmatmul.mubr.bf16.gmra.mrb[0].mxu0 %v883
    %v1025 = vpop.f32.mrb[0].mxu0
    %v1026 = vadd.f32 %v917, %v1025
    %v1027 = vpop.f32.mrb[0].mxu0
    %v1028 = vpop.f32.mrb[0].mxu0
    %v1029 = vadd.f32 %v917, %v1028
    %v1030 = vpop.f32.mrb[0].mxu0
    %1031 = vmatprep.mubr.bf16.mxu0 0
    %1032 = vmatmul.mubr.bf16.gmra.mrb[0].mxu0 %v884
    %v1033 = vpop.f32.mrb[0].mxu0
    %v1034 = vadd.f32 %v917, %v1033
    %v1035 = vpop.f32.mrb[0].mxu0
    %v1036 = vpop.f32.mrb[0].mxu0
    %v1037 = vadd.f32 %v917, %v1036
    %v1038 = vpop.f32.mrb[0].mxu0
    %1039 = vmatprep.mubr.bf16.mxu0 0
    %1040 = vmatmul.mubr.bf16.gmra.mrb[0].mxu0 %v885
    %v1041 = vpop.f32.mrb[0].mxu0
    %v1042 = vadd.f32 %v917, %v1041
    %v1043 = vpop.f32.mrb[0].mxu0
    %v1044 = vpop.f32.mrb[0].mxu0
    %v1045 = vadd.f32 %v917, %v1044
    %v1046 = vpop.f32.mrb[0].mxu0
    %1047 = vmatprep.mubr.bf16.mxu0 0
    %1048 = vmatmul.mubr.bf16.gmra.mrb[0].mxu0 %v886
    %v1049 = vpop.f32.mrb[0].mxu0
    %v1050 = vadd.f32 %v917, %v1049
    %v1051 = vpop.f32.mrb[0].mxu0
    %v1052 = vpop.f32.mrb[0].mxu0
    %v1053 = vadd.f32 %v917, %v1052
    %v1054 = vpop.f32.mrb[0].mxu0
    %1055 = vmatprep.mubr.bf16.mxu0 0
    %1056 = vmatmul.mubr.bf16.gmra.mrb[0].mxu0 %v887
    %v1057 = vpop.f32.mrb[0].mxu0
    %v1058 = vadd.f32 %v917, %v1057
    %v1059 = vpop.f32.mrb[0].mxu0
    %v1060 = vpop.f32.mrb[0].mxu0
    %v1061 = vadd.f32 %v917, %v1060
    %v1062 = vpop.f32.mrb[0].mxu0
    %1063 = vmatprep.mubr.bf16.mxu0 0
    %1064 = vmatmul.mubr.bf16.gmra.mrb[0].mxu0 %v888
    %v1065 = vpop.f32.mrb[0].mxu0
    %v1066 = vadd.f32 %v917, %v1065
    %v1067 = vpop.f32.mrb[0].mxu0
    %v1068 = vpop.f32.mrb[0].mxu0
    %v1069 = vadd.f32 %v917, %v1068
    %v1070 = vpop.f32.mrb[0].mxu0
    %1071 = vmatprep.mubr.bf16.mxu0 0
    %1072 = vmatmul.mubr.bf16.gmra.mrb[0].mxu0 %v889
    %v1073 = vpop.f32.mrb[0].mxu0
    %v1074 = vadd.f32 %v917, %v1073
    %v1075 = vpop.f32.mrb[0].mxu0
    %v1076 = vpop.f32.mrb[0].mxu0
    %v1077 = vadd.f32 %v917, %v1076
    %v1078 = vpop.f32.mrb[0].mxu0
    %1079 = vmatprep.mubr.bf16.mxu0 0
    %1080 = vmatmul.mubr.bf16.gmra.mrb[0].mxu0 %v890
    %v1081 = vpop.f32.mrb[0].mxu0
    %v1082 = vadd.f32 %v917, %v1081
    %v1083 = vpop.f32.mrb[0].mxu0
    %v1084 = vpop.f32.mrb[0].mxu0
    %v1085 = vadd.f32 %v917, %v1084
    %v1086 = vpop.f32.mrb[0].mxu0
    %1087 = vmatprep.mubr.bf16.mxu0 0
    %1088 = vmatmul.mubr.bf16.gmra.mrb[0].mxu0 %v891
    %v1089 = vpop.f32.mrb[0].mxu0
    %v1090 = vadd.f32 %v917, %v1089
    %v1091 = vpop.f32.mrb[0].mxu0
    %v1092 = vpop.f32.mrb[0].mxu0
    %v1093 = vadd.f32 %v917, %v1092
    %v1094 = vpop.f32.mrb[0].mxu0
    %1095 = vmatprep.mubr.bf16.mxu0 0
    %1096 = vmatmul.mubr.bf16.gmra.mrb[0].mxu0 %v892
    %v1097 = vpop.f32.mrb[0].mxu0
    %v1098 = vadd.f32 %v917, %v1097
    %v1099 = vpop.f32.mrb[0].mxu0
    %v1100 = vpop.f32.mrb[0].mxu0
    %v1101 = vadd.f32 %v917, %v1100
    %v1102 = vpop.f32.mrb[0].mxu0
    %1103 = vmatprep.mubr.bf16.mxu0 0
    %1104 = vmatmul.mubr.bf16.gmra.mrb[0].mxu0 %v893
    %v1105 = vpop.f32.mrb[0].mxu0
    %v1106 = vadd.f32 %v917, %v1105
    %v1107 = vpop.f32.mrb[0].mxu0
    %v1108 = vpop.f32.mrb[0].mxu0
    %v1109 = vadd.f32 %v917, %v1108
    %v1110 = vpop.f32.mrb[0].mxu0
    %1111 = vmatprep.mubr.bf16.mxu0 0
    %1112 = vmatmul.mubr.bf16.gmra.mrb[0].mxu0 %v894
    %v1113 = vpop.f32.mrb[0].mxu0
    %v1114 = vadd.f32 %v917, %v1113
    %v1115 = vpop.f32.mrb[0].mxu0
    %v1116 = vpop.f32.mrb[0].mxu0
    %v1117 = vadd.f32 %v917, %v1116
    %v1118 = vpop.f32.mrb[0].mxu0
    %1119 = vmatprep.mubr.bf16.mxu0 0
    %1120 = vmatmul.mubr.bf16.gmra.mrb[0].mxu0 %v895
    %v1121 = vpop.f32.mrb[0].mxu0
    %v1122 = vadd.f32 %v917, %v1121
    %v1123 = vpop.f32.mrb[0].mxu0
    %v1124 = vpop.f32.mrb[0].mxu0
    %v1125 = vadd.f32 %v917, %v1124
    %v1126 = vpop.f32.mrb[0].mxu0
    %1127 = vdwg.mxu0
    %v1128 = vmul.f32 %v1002, 0.1
    %v1129 = vmul.f32 %v1005, 0.1
    %v1130 = vmul.f32 %v1010, 0.1
    %v1131 = vmul.f32 %v1013, 0.1
    %v1132 = vmul.f32 %v1018, 0.1
    %v1133 = vmul.f32 %v1021, 0.1
    %v1134 = vmul.f32 %v1026, 0.1
    %v1135 = vmul.f32 %v1029, 0.1
    %v1136 = vmul.f32 %v1034, 0.1
    %v1137 = vmul.f32 %v1037, 0.1
    %v1138 = vmul.f32 %v1042, 0.1
    %v1139 = vmul.f32 %v1045, 0.1
    %v1140 = vmul.f32 %v1050, 0.1
    %v1141 = vmul.f32 %v1053, 0.1
    %v1142 = vmul.f32 %v1058, 0.1
    %v1143 = vmul.f32 %v1061, 0.1
    %v1144 = vmul.f32 %v1066, 0.1
    %v1145 = vmul.f32 %v1069, 0.1
    %v1146 = vmul.f32 %v1074, 0.1
    %v1147 = vmul.f32 %v1077, 0.1
    %v1148 = vmul.f32 %v1082, 0.1
    %v1149 = vmul.f32 %v1085, 0.1
    %v1150 = vmul.f32 %v1090, 0.1
    %v1151 = vmul.f32 %v1093, 0.1
    %v1152 = vmul.f32 %v1098, 0.1
    %v1153 = vmul.f32 %v1101, 0.1
    %v1154 = vmul.f32 %v1106, 0.1
    %v1155 = vmul.f32 %v1109, 0.1
    %v1156 = vmul.f32 %v1114, 0.1
    %v1157 = vmul.f32 %v1117, 0.1
    %v1158 = vmul.f32 %v1122, 0.1
    %v1159 = vmul.f32 %v1125, 0.1
    %v1160 = vmax.f32 %v1002, %v1128
    %v1161 = vmax.f32 %v1005, %v1129
    %v1162 = vmax.f32 %v1010, %v1130
    %v1163 = vmax.f32 %v1013, %v1131
    %v1164 = vmax.f32 %v1018, %v1132
    %v1165 = vmax.f32 %v1021, %v1133
    %v1166 = vmax.f32 %v1026, %v1134
    %v1167 = vmax.f32 %v1029, %v1135
    %v1168 = vmax.f32 %v1034, %v1136
    %v1169 = vmax.f32 %v1037, %v1137
    %v1170 = vmax.f32 %v1042, %v1138
    %v1171 = vmax.f32 %v1045, %v1139
    %v1172 = vmax.f32 %v1050, %v1140
    %v1173 = vmax.f32 %v1053, %v1141
    %v1174 = vmax.f32 %v1058, %v1142
    %v1175 = vmax.f32 %v1061, %v1143
    %v1176 = vmax.f32 %v1066, %v1144
    %v1177 = vmax.f32 %v1069, %v1145
    %v1178 = vmax.f32 %v1074, %v1146
    %v1179 = vmax.f32 %v1077, %v1147
    %v1180 = vmax.f32 %v1082, %v1148
    %v1181 = vmax.f32 %v1085, %v1149
    %v1182 = vmax.f32 %v1090, %v1150
    %v1183 = vmax.f32 %v1093, %v1151
    %v1184 = vmax.f32 %v1098, %v1152
    %v1185 = vmax.f32 %v1101, %v1153
    %v1186 = vmax.f32 %v1106, %v1154
    %v1187 = vmax.f32 %v1109, %v1155
    %v1188 = vmax.f32 %v1114, %v1156
    %v1189 = vmax.f32 %v1117, %v1157
    %v1190 = vmax.f32 %v1122, %v1158
    %v1191 = vmax.f32 %v1125, %v1159
    %v1192 = vpack.c.bf16 %v1161, %v1160
    %v1193 = vpack.c.bf16 %v1163, %v1162
    %v1194 = vpack.c.bf16 %v1165, %v1164
    %v1195 = vpack.c.bf16 %v1167, %v1166
    %v1196 = vpack.c.bf16 %v1169, %v1168
    %v1197 = vpack.c.bf16 %v1171, %v1170
    %v1198 = vpack.c.bf16 %v1173, %v1172
    %v1199 = vpack.c.bf16 %v1175, %v1174
    %v1200 = vpack.c.bf16 %v1177, %v1176
    %v1201 = vpack.c.bf16 %v1179, %v1178
    %v1202 = vpack.c.bf16 %v1181, %v1180
    %v1203 = vpack.c.bf16 %v1183, %v1182
    %v1204 = vpack.c.bf16 %v1185, %v1184
    %v1205 = vpack.c.bf16 %v1187, %v1186
    %v1206 = vpack.c.bf16 %v1189, %v1188
    %v1207 = vpack.c.bf16 %v1191, %v1190
    %v1208 = vld [vmem:[%s7] sm:$0xf]
    %v1209 = vld [vmem:[%s7 + $0x4] sm:$0xf]
    %v1210 = vld [vmem:[%s7 + $0x8] sm:$0xf]
    %v1211 = vld [vmem:[%s7 + $0xc] sm:$0xf]
    %v1212 = vld [vmem:[%s7 + $0x10] sm:$0xf]
    %v1213 = vld [vmem:[%s7 + $0x14] sm:$0xf]
    %v1214 = vld [vmem:[%s7 + $0x18] sm:$0xf]
    %v1215 = vld [vmem:[%s7 + $0x1c] sm:$0xf]
    %v1216 = vld [vmem:[%s7 + $0x20] sm:$0xf]
    %v1217 = vld [vmem:[%s7 + $0x24] sm:$0xf]
    %v1218 = vld [vmem:[%s7 + $0x28] sm:$0xf]
    %v1219 = vld [vmem:[%s7 + $0x2c] sm:$0xf]
    %v1220 = vld [vmem:[%s7 + $0x30] sm:$0xf]
    %v1221 = vld [vmem:[%s7 + $0x34] sm:$0xf]
    %v1222 = vld [vmem:[%s7 + $0x38] sm:$0xf]
    %v1223 = vld [vmem:[%s7 + $0x3c] sm:$0xf]
    %v1224 = vld [vmem:[%s8] sm:$0x1]
    %v1226 = vlaneseq
    %v1227 = vshrl.u32 %v1226, 7
    %v1228 = vsub.s32 0, %v1227
    %v1229 = vrot.slane %v1224, %v1228
    %v1247 = vunpack.c.l.b16 %v1208
    %v1248 = vunpack.c.l.b16 %v1209
    %v1249 = vunpack.c.l.b16 %v1210
    %v1250 = vunpack.c.l.b16 %v1211
    %v1251 = vunpack.c.l.b16 %v1212
    %v1252 = vunpack.c.l.b16 %v1213
    %v1253 = vunpack.c.l.b16 %v1214
    %v1254 = vunpack.c.l.b16 %v1215
    %v1255 = vunpack.c.l.b16 %v1216
    %v1256 = vunpack.c.l.b16 %v1217
    %v1257 = vunpack.c.l.b16 %v1218
    %v1258 = vunpack.c.l.b16 %v1219
    %v1259 = vunpack.c.l.b16 %v1220
    %v1260 = vunpack.c.l.b16 %v1221
    %v1261 = vunpack.c.l.b16 %v1222
    %v1262 = vunpack.c.l.b16 %v1223
    %v1263 = vpack.c.b16 %v1248, %v1247
    %v1264 = vpack.c.b16 %v1250, %v1249
    %v1265 = vpack.c.b16 %v1252, %v1251
    %v1266 = vpack.c.b16 %v1254, %v1253
    %v1267 = vpack.c.b16 %v1256, %v1255
    %v1268 = vpack.c.b16 %v1258, %v1257
    %v1269 = vpack.c.b16 %v1260, %v1259
    %v1270 = vpack.c.b16 %v1262, %v1261
    %1279 = vmatprep.subr.bf16.mxu0 0
    %1280 = vmatpush1.bf16.msra.mxu0 %v1263
    %1281 = vmatprep.subr.bf16.mxu0 0
    %1282 = vmatpush1.bf16.msra.mxu0 %v1264
    %1283 = vmatprep.subr.bf16.mxu0 0
    %1284 = vmatpush1.bf16.msra.mxu0 %v1265
    %1285 = vmatprep.subr.bf16.mxu0 0
    %1286 = vmatpush1.bf16.msra.mxu0 %v1266
    %1287 = vmatprep.subr.bf16.mxu0 0
    %1288 = vmatpush1.bf16.msra.mxu0 %v1267
    %1289 = vmatprep.subr.bf16.mxu0 0
    %1290 = vmatpush1.bf16.msra.mxu0 %v1268
    %1291 = vmatprep.subr.bf16.mxu0 0
    %1292 = vmatpush1.bf16.msra.mxu0 %v1269
    %1293 = vmatprep.subr.bf16.mxu0 0
    %1294 = vmatpush1.bf16.msra.mxu0 %v1270
    %1295 = vmatprep.subr.bf16.mxu0 0
    %1296 = vmatpush1.bf16.msra.mxu0 0
    %1297 = vmatprep.subr.bf16.mxu0 0
    %1298 = vmatpush1.bf16.msra.mxu0 0
    %1299 = vmatprep.subr.bf16.mxu0 0
    %1300 = vmatpush1.bf16.msra.mxu0 0
    %1301 = vmatprep.subr.bf16.mxu0 0
    %1302 = vmatpush1.bf16.msra.mxu0 0
    %1303 = vmatprep.subr.bf16.mxu0 0
    %1304 = vmatpush1.bf16.msra.mxu0 0
    %1305 = vmatprep.subr.bf16.mxu0 0
    %1306 = vmatpush1.bf16.msra.mxu0 0
    %1307 = vmatprep.subr.bf16.mxu0 0
    %1308 = vmatpush1.bf16.msra.mxu0 0
    %1309 = vmatprep.subr.bf16.mxu0 0
    %1310 = vmatpush1.bf16.msra.mxu0 0
    %1311 = vmatprep.mubr.bf16.mxu0 0
    %1312 = vmatmul.mubr.bf16.gmra.mrb[0].mxu0 %v1192
    %v1313 = vpop.f32.mrb[0].mxu0
    %v1314 = vadd.f32 %v1229, %v1313
    %v1315 = vpop.f32.mrb[0].mxu0
    %v1316 = vpop.f32.mrb[0].mxu0
    %v1317 = vadd.f32 %v1229, %v1316
    %v1318 = vpop.f32.mrb[0].mxu0
    %1319 = vmatprep.mubr.bf16.mxu0 0
    %1320 = vmatmul.mubr.bf16.gmra.mrb[0].mxu0 %v1193
    %v1321 = vpop.f32.mrb[0].mxu0
    %v1322 = vadd.f32 %v1229, %v1321
    %v1323 = vpop.f32.mrb[0].mxu0
    %v1324 = vpop.f32.mrb[0].mxu0
    %v1325 = vadd.f32 %v1229, %v1324
    %v1326 = vpop.f32.mrb[0].mxu0
    %1327 = vmatprep.mubr.bf16.mxu0 0
    %1328 = vmatmul.mubr.bf16.gmra.mrb[0].mxu0 %v1194
    %v1329 = vpop.f32.mrb[0].mxu0
    %v1330 = vadd.f32 %v1229, %v1329
    %v1331 = vpop.f32.mrb[0].mxu0
    %v1332 = vpop.f32.mrb[0].mxu0
    %v1333 = vadd.f32 %v1229, %v1332
    %v1334 = vpop.f32.mrb[0].mxu0
    %1335 = vmatprep.mubr.bf16.mxu0 0
    %1336 = vmatmul.mubr.bf16.gmra.mrb[0].mxu0 %v1195
    %v1337 = vpop.f32.mrb[0].mxu0
    %v1338 = vadd.f32 %v1229, %v1337
    %v1339 = vpop.f32.mrb[0].mxu0
    %v1340 = vpop.f32.mrb[0].mxu0
    %v1341 = vadd.f32 %v1229, %v1340
    %v1342 = vpop.f32.mrb[0].mxu0
    %1343 = vmatprep.mubr.bf16.mxu0 0
    %1344 = vmatmul.mubr.bf16.gmra.mrb[0].mxu0 %v1196
    %v1345 = vpop.f32.mrb[0].mxu0
    %v1346 = vadd.f32 %v1229, %v1345
    %v1347 = vpop.f32.mrb[0].mxu0
    %v1348 = vpop.f32.mrb[0].mxu0
    %v1349 = vadd.f32 %v1229, %v1348
    %v1350 = vpop.f32.mrb[0].mxu0
    %1351 = vmatprep.mubr.bf16.mxu0 0
    %1352 = vmatmul.mubr.bf16.gmra.mrb[0].mxu0 %v1197
    %v1353 = vpop.f32.mrb[0].mxu0
    %v1354 = vadd.f32 %v1229, %v1353
    %v1355 = vpop.f32.mrb[0].mxu0
    %v1356 = vpop.f32.mrb[0].mxu0
    %v1357 = vadd.f32 %v1229, %v1356
    %v1358 = vpop.f32.mrb[0].mxu0
    %1359 = vmatprep.mubr.bf16.mxu0 0
    %1360 = vmatmul.mubr.bf16.gmra.mrb[0].mxu0 %v1198
    %v1361 = vpop.f32.mrb[0].mxu0
    %v1362 = vadd.f32 %v1229, %v1361
    %v1363 = vpop.f32.mrb[0].mxu0
    %v1364 = vpop.f32.mrb[0].mxu0
    %v1365 = vadd.f32 %v1229, %v1364
    %v1366 = vpop.f32.mrb[0].mxu0
    %1367 = vmatprep.mubr.bf16.mxu0 0
    %1368 = vmatmul.mubr.bf16.gmra.mrb[0].mxu0 %v1199
    %v1369 = vpop.f32.mrb[0].mxu0
    %v1370 = vadd.f32 %v1229, %v1369
    %v1371 = vpop.f32.mrb[0].mxu0
    %v1372 = vpop.f32.mrb[0].mxu0
    %v1373 = vadd.f32 %v1229, %v1372
    %v1374 = vpop.f32.mrb[0].mxu0
    %1375 = vmatprep.mubr.bf16.mxu0 0
    %1376 = vmatmul.mubr.bf16.gmra.mrb[0].mxu0 %v1200
    %v1377 = vpop.f32.mrb[0].mxu0
    %v1378 = vadd.f32 %v1229, %v1377
    %v1379 = vpop.f32.mrb[0].mxu0
    %v1380 = vpop.f32.mrb[0].mxu0
    %v1381 = vadd.f32 %v1229, %v1380
    %v1382 = vpop.f32.mrb[0].mxu0
    %1383 = vmatprep.mubr.bf16.mxu0 0
    %1384 = vmatmul.mubr.bf16.gmra.mrb[0].mxu0 %v1201
    %v1385 = vpop.f32.mrb[0].mxu0
    %v1386 = vadd.f32 %v1229, %v1385
    %v1387 = vpop.f32.mrb[0].mxu0
    %v1388 = vpop.f32.mrb[0].mxu0
    %v1389 = vadd.f32 %v1229, %v1388
    %v1390 = vpop.f32.mrb[0].mxu0
    %1391 = vmatprep.mubr.bf16.mxu0 0
    %1392 = vmatmul.mubr.bf16.gmra.mrb[0].mxu0 %v1202
    %v1393 = vpop.f32.mrb[0].mxu0
    %v1394 = vadd.f32 %v1229, %v1393
    %v1395 = vpop.f32.mrb[0].mxu0
    %v1396 = vpop.f32.mrb[0].mxu0
    %v1397 = vadd.f32 %v1229, %v1396
    %v1398 = vpop.f32.mrb[0].mxu0
    %1399 = vmatprep.mubr.bf16.mxu0 0
    %1400 = vmatmul.mubr.bf16.gmra.mrb[0].mxu0 %v1203
    %v1401 = vpop.f32.mrb[0].mxu0
    %v1402 = vadd.f32 %v1229, %v1401
    %v1403 = vpop.f32.mrb[0].mxu0
    %v1404 = vpop.f32.mrb[0].mxu0
    %v1405 = vadd.f32 %v1229, %v1404
    %v1406 = vpop.f32.mrb[0].mxu0
    %1407 = vmatprep.mubr.bf16.mxu0 0
    %1408 = vmatmul.mubr.bf16.gmra.mrb[0].mxu0 %v1204
    %v1409 = vpop.f32.mrb[0].mxu0
    %v1410 = vadd.f32 %v1229, %v1409
    %v1411 = vpop.f32.mrb[0].mxu0
    %v1412 = vpop.f32.mrb[0].mxu0
    %v1413 = vadd.f32 %v1229, %v1412
    %v1414 = vpop.f32.mrb[0].mxu0
    %1415 = vmatprep.mubr.bf16.mxu0 0
    %1416 = vmatmul.mubr.bf16.gmra.mrb[0].mxu0 %v1205
    %v1417 = vpop.f32.mrb[0].mxu0
    %v1418 = vadd.f32 %v1229, %v1417
    %v1419 = vpop.f32.mrb[0].mxu0
    %v1420 = vpop.f32.mrb[0].mxu0
    %v1421 = vadd.f32 %v1229, %v1420
    %v1422 = vpop.f32.mrb[0].mxu0
    %1423 = vmatprep.mubr.bf16.mxu0 0
    %1424 = vmatmul.mubr.bf16.gmra.mrb[0].mxu0 %v1206
    %v1425 = vpop.f32.mrb[0].mxu0
    %v1426 = vadd.f32 %v1229, %v1425
    %v1427 = vpop.f32.mrb[0].mxu0
    %v1428 = vpop.f32.mrb[0].mxu0
    %v1429 = vadd.f32 %v1229, %v1428
    %v1430 = vpop.f32.mrb[0].mxu0
    %1431 = vmatprep.mubr.bf16.mxu0 0
    %1432 = vmatmul.mubr.bf16.gmra.mrb[0].mxu0 %v1207
    %v1433 = vpop.f32.mrb[0].mxu0
    %v1434 = vadd.f32 %v1229, %v1433
    %v1435 = vpop.f32.mrb[0].mxu0
    %v1436 = vpop.f32.mrb[0].mxu0
    %v1437 = vadd.f32 %v1229, %v1436
    %v1438 = vpop.f32.mrb[0].mxu0
    %1439 = vdwg.mxu0
    %1440 = vmax.xlane.f32.xlu0 %v1314
    %v1441 = vpop.xlane.xlu0 %1440
    %1442 = vmax.xlane.f32.xlu0 %v1317
    %v1443 = vpop.xlane.xlu0 %1442
    %1444 = vmax.xlane.f32.xlu0 %v1322
    %v1445 = vpop.xlane.xlu0 %1444
    %1446 = vmax.xlane.f32.xlu0 %v1325
    %v1447 = vpop.xlane.xlu0 %1446
    %1448 = vmax.xlane.f32.xlu0 %v1330
    %v1449 = vpop.xlane.xlu0 %1448
    %1450 = vmax.xlane.f32.xlu0 %v1333
    %v1451 = vpop.xlane.xlu0 %1450
    %1452 = vmax.xlane.f32.xlu0 %v1338
    %v1453 = vpop.xlane.xlu0 %1452
    %1454 = vmax.xlane.f32.xlu0 %v1341
    %v1455 = vpop.xlane.xlu0 %1454
    %1456 = vmax.xlane.f32.xlu0 %v1346
    %v1457 = vpop.xlane.xlu0 %1456
    %1458 = vmax.xlane.f32.xlu0 %v1349
    %v1459 = vpop.xlane.xlu0 %1458
    %1460 = vmax.xlane.f32.xlu0 %v1354
    %v1461 = vpop.xlane.xlu0 %1460
    %1462 = vmax.xlane.f32.xlu0 %v1357
    %v1463 = vpop.xlane.xlu0 %1462
    %1464 = vmax.xlane.f32.xlu0 %v1362
    %v1465 = vpop.xlane.xlu0 %1464
    %1466 = vmax.xlane.f32.xlu0 %v1365
    %v1467 = vpop.xlane.xlu0 %1466
    %1468 = vmax.xlane.f32.xlu0 %v1370
    %v1469 = vpop.xlane.xlu0 %1468
    %1470 = vmax.xlane.f32.xlu0 %v1373
    %v1471 = vpop.xlane.xlu0 %1470
    %1472 = vmax.xlane.f32.xlu0 %v1378
    %v1473 = vpop.xlane.xlu0 %1472
    %1474 = vmax.xlane.f32.xlu0 %v1381
    %v1475 = vpop.xlane.xlu0 %1474
    %1476 = vmax.xlane.f32.xlu0 %v1386
    %v1477 = vpop.xlane.xlu0 %1476
    %1478 = vmax.xlane.f32.xlu0 %v1389
    %v1479 = vpop.xlane.xlu0 %1478
    %1480 = vmax.xlane.f32.xlu0 %v1394
    %v1481 = vpop.xlane.xlu0 %1480
    %1482 = vmax.xlane.f32.xlu0 %v1397
    %v1483 = vpop.xlane.xlu0 %1482
    %1484 = vmax.xlane.f32.xlu0 %v1402
    %v1485 = vpop.xlane.xlu0 %1484
    %1486 = vmax.xlane.f32.xlu0 %v1405
    %v1487 = vpop.xlane.xlu0 %1486
    %1488 = vmax.xlane.f32.xlu0 %v1410
    %v1489 = vpop.xlane.xlu0 %1488
    %1490 = vmax.xlane.f32.xlu0 %v1413
    %v1491 = vpop.xlane.xlu0 %1490
    %1492 = vmax.xlane.f32.xlu0 %v1418
    %v1493 = vpop.xlane.xlu0 %1492
    %1494 = vmax.xlane.f32.xlu0 %v1421
    %v1495 = vpop.xlane.xlu0 %1494
    %1496 = vmax.xlane.f32.xlu0 %v1426
    %v1497 = vpop.xlane.xlu0 %1496
    %1498 = vmax.xlane.f32.xlu0 %v1429
    %v1499 = vpop.xlane.xlu0 %1498
    %1500 = vmax.xlane.f32.xlu0 %v1434
    %v1501 = vpop.xlane.xlu0 %1500
    %1502 = vmax.xlane.f32.xlu0 %v1437
    %v1503 = vpop.xlane.xlu0 %1502
    %v1504 = vsub.f32 %v1314, %v1441
    %v1505 = vsub.f32 %v1317, %v1443
    %v1506 = vsub.f32 %v1322, %v1445
    %v1507 = vsub.f32 %v1325, %v1447
    %v1508 = vsub.f32 %v1330, %v1449
    %v1509 = vsub.f32 %v1333, %v1451
    %v1510 = vsub.f32 %v1338, %v1453
    %v1511 = vsub.f32 %v1341, %v1455
    %v1512 = vsub.f32 %v1346, %v1457
    %v1513 = vsub.f32 %v1349, %v1459
    %v1514 = vsub.f32 %v1354, %v1461
    %v1515 = vsub.f32 %v1357, %v1463
    %v1516 = vsub.f32 %v1362, %v1465
    %v1517 = vsub.f32 %v1365, %v1467
    %v1518 = vsub.f32 %v1370, %v1469
    %v1519 = vsub.f32 %v1373, %v1471
    %v1520 = vsub.f32 %v1378, %v1473
    %v1521 = vsub.f32 %v1381, %v1475
    %v1522 = vsub.f32 %v1386, %v1477
    %v1523 = vsub.f32 %v1389, %v1479
    %v1524 = vsub.f32 %v1394, %v1481
    %v1525 = vsub.f32 %v1397, %v1483
    %v1526 = vsub.f32 %v1402, %v1485
    %v1527 = vsub.f32 %v1405, %v1487
    %v1528 = vsub.f32 %v1410, %v1489
    %v1529 = vsub.f32 %v1413, %v1491
    %v1530 = vsub.f32 %v1418, %v1493
    %v1531 = vsub.f32 %v1421, %v1495
    %v1532 = vsub.f32 %v1426, %v1497
    %v1533 = vsub.f32 %v1429, %v1499
    %v1534 = vsub.f32 %v1434, %v1501
    %v1535 = vsub.f32 %v1437, %v1503
    %v1536 = vmul.f32 %v1504, 1.442695
    %v1537 = vpow.pop %v1536
    %v1538 = vmul.f32 %v1505, 1.442695
    %v1539 = vpow.pop %v1538
    %v1540 = vmul.f32 %v1506, 1.442695
    %v1541 = vpow.pop %v1540
    %v1542 = vmul.f32 %v1507, 1.442695
    %v1543 = vpow.pop %v1542
    %v1544 = vmul.f32 %v1508, 1.442695
    %v1545 = vpow.pop %v1544
    %v1546 = vmul.f32 %v1509, 1.442695
    %v1547 = vpow.pop %v1546
    %v1548 = vmul.f32 %v1510, 1.442695
    %v1549 = vpow.pop %v1548
    %v1550 = vmul.f32 %v1511, 1.442695
    %v1551 = vpow.pop %v1550
    %v1552 = vmul.f32 %v1512, 1.442695
    %v1553 = vpow.pop %v1552
    %v1554 = vmul.f32 %v1513, 1.442695
    %v1555 = vpow.pop %v1554
    %v1556 = vmul.f32 %v1514, 1.442695
    %v1557 = vpow.pop %v1556
    %v1558 = vmul.f32 %v1515, 1.442695
    %v1559 = vpow.pop %v1558
    %v1560 = vmul.f32 %v1516, 1.442695
    %v1561 = vpow.pop %v1560
    %v1562 = vmul.f32 %v1517, 1.442695
    %v1563 = vpow.pop %v1562
    %v1564 = vmul.f32 %v1518, 1.442695
    %v1565 = vpow.pop %v1564
    %v1566 = vmul.f32 %v1519, 1.442695
    %v1567 = vpow.pop %v1566
    %v1568 = vmul.f32 %v1520, 1.442695
    %v1569 = vpow.pop %v1568
    %v1570 = vmul.f32 %v1521, 1.442695
    %v1571 = vpow.pop %v1570
    %v1572 = vmul.f32 %v1522, 1.442695
    %v1573 = vpow.pop %v1572
    %v1574 = vmul.f32 %v1523, 1.442695
    %v1575 = vpow.pop %v1574
    %v1576 = vmul.f32 %v1524, 1.442695
    %v1577 = vpow.pop %v1576
    %v1578 = vmul.f32 %v1525, 1.442695
    %v1579 = vpow.pop %v1578
    %v1580 = vmul.f32 %v1526, 1.442695
    %v1581 = vpow.pop %v1580
    %v1582 = vmul.f32 %v1527, 1.442695
    %v1583 = vpow.pop %v1582
    %v1584 = vmul.f32 %v1528, 1.442695
    %v1585 = vpow.pop %v1584
    %v1586 = vmul.f32 %v1529, 1.442695
    %v1587 = vpow.pop %v1586
    %v1588 = vmul.f32 %v1530, 1.442695
    %v1589 = vpow.pop %v1588
    %v1590 = vmul.f32 %v1531, 1.442695
    %v1591 = vpow.pop %v1590
    %v1592 = vmul.f32 %v1532, 1.442695
    %v1593 = vpow.pop %v1592
    %v1594 = vmul.f32 %v1533, 1.442695
    %v1595 = vpow.pop %v1594
    %v1596 = vmul.f32 %v1534, 1.442695
    %v1597 = vpow.pop %v1596
    %v1598 = vmul.f32 %v1535, 1.442695
    %v1599 = vpow.pop %v1598
    %1600 = vadd.xlane.f32.xlu0 %v1537
    %v1601 = vpop.xlane.xlu0 %1600
    %1602 = vadd.xlane.f32.xlu0 %v1539
    %v1603 = vpop.xlane.xlu0 %1602
    %1604 = vadd.xlane.f32.xlu0 %v1541
    %v1605 = vpop.xlane.xlu0 %1604
    %1606 = vadd.xlane.f32.xlu0 %v1543
    %v1607 = vpop.xlane.xlu0 %1606
    %1608 = vadd.xlane.f32.xlu0 %v1545
    %v1609 = vpop.xlane.xlu0 %1608
    %1610 = vadd.xlane.f32.xlu0 %v1547
    %v1611 = vpop.xlane.xlu0 %1610
    %1612 = vadd.xlane.f32.xlu0 %v1549
    %v1613 = vpop.xlane.xlu0 %1612
    %1614 = vadd.xlane.f32.xlu0 %v1551
    %v1615 = vpop.xlane.xlu0 %1614
    %1616 = vadd.xlane.f32.xlu0 %v1553
    %v1617 = vpop.xlane.xlu0 %1616
    %1618 = vadd.xlane.f32.xlu0 %v1555
    %v1619 = vpop.xlane.xlu0 %1618
    %1620 = vadd.xlane.f32.xlu0 %v1557
    %v1621 = vpop.xlane.xlu0 %1620
    %1622 = vadd.xlane.f32.xlu0 %v1559
    %v1623 = vpop.xlane.xlu0 %1622
    %1624 = vadd.xlane.f32.xlu0 %v1561
    %v1625 = vpop.xlane.xlu0 %1624
    %1626 = vadd.xlane.f32.xlu0 %v1563
    %v1627 = vpop.xlane.xlu0 %1626
    %1628 = vadd.xlane.f32.xlu0 %v1565
    %v1629 = vpop.xlane.xlu0 %1628
    %1630 = vadd.xlane.f32.xlu0 %v1567
    %v1631 = vpop.xlane.xlu0 %1630
    %1632 = vadd.xlane.f32.xlu0 %v1569
    %v1633 = vpop.xlane.xlu0 %1632
    %1634 = vadd.xlane.f32.xlu0 %v1571
    %v1635 = vpop.xlane.xlu0 %1634
    %1636 = vadd.xlane.f32.xlu0 %v1573
    %v1637 = vpop.xlane.xlu0 %1636
    %1638 = vadd.xlane.f32.xlu0 %v1575
    %v1639 = vpop.xlane.xlu0 %1638
    %1640 = vadd.xlane.f32.xlu0 %v1577
    %v1641 = vpop.xlane.xlu0 %1640
    %1642 = vadd.xlane.f32.xlu0 %v1579
    %v1643 = vpop.xlane.xlu0 %1642
    %1644 = vadd.xlane.f32.xlu0 %v1581
    %v1645 = vpop.xlane.xlu0 %1644
    %1646 = vadd.xlane.f32.xlu0 %v1583
    %v1647 = vpop.xlane.xlu0 %1646
    %1648 = vadd.xlane.f32.xlu0 %v1585
    %v1649 = vpop.xlane.xlu0 %1648
    %1650 = vadd.xlane.f32.xlu0 %v1587
    %v1651 = vpop.xlane.xlu0 %1650
    %1652 = vadd.xlane.f32.xlu0 %v1589
    %v1653 = vpop.xlane.xlu0 %1652
    %1654 = vadd.xlane.f32.xlu0 %v1591
    %v1655 = vpop.xlane.xlu0 %1654
    %1656 = vadd.xlane.f32.xlu0 %v1593
    %v1657 = vpop.xlane.xlu0 %1656
    %1658 = vadd.xlane.f32.xlu0 %v1595
    %v1659 = vpop.xlane.xlu0 %1658
    %1660 = vadd.xlane.f32.xlu0 %v1597
    %v1661 = vpop.xlane.xlu0 %1660
    %1662 = vadd.xlane.f32.xlu0 %v1599
    %v1663 = vpop.xlane.xlu0 %1662
    %v1664 = vrcp.pop %v1601
    %v1665 = vrcp.pop %v1603
    %v1666 = vrcp.pop %v1605
    %v1667 = vrcp.pop %v1607
    %v1668 = vrcp.pop %v1609
    %v1669 = vrcp.pop %v1611
    %v1670 = vrcp.pop %v1613
    %v1671 = vrcp.pop %v1615
    %v1672 = vrcp.pop %v1617
    %v1673 = vrcp.pop %v1619
    %v1674 = vrcp.pop %v1621
    %v1675 = vrcp.pop %v1623
    %v1676 = vrcp.pop %v1625
    %v1677 = vrcp.pop %v1627
    %v1678 = vrcp.pop %v1629
    %v1679 = vrcp.pop %v1631
    %v1680 = vrcp.pop %v1633
    %v1681 = vrcp.pop %v1635
    %v1682 = vrcp.pop %v1637
    %v1683 = vrcp.pop %v1639
    %v1684 = vrcp.pop %v1641
    %v1685 = vrcp.pop %v1643
    %v1686 = vrcp.pop %v1645
    %v1687 = vrcp.pop %v1647
    %v1688 = vrcp.pop %v1649
    %v1689 = vrcp.pop %v1651
    %v1690 = vrcp.pop %v1653
    %v1691 = vrcp.pop %v1655
    %v1692 = vrcp.pop %v1657
    %v1693 = vrcp.pop %v1659
    %v1694 = vrcp.pop %v1661
    %v1695 = vrcp.pop %v1663
    %v1696 = vmul.f32 %v1537, %v1664
    %v1697 = vmul.f32 %v1539, %v1665
    %v1698 = vmul.f32 %v1541, %v1666
    %v1699 = vmul.f32 %v1543, %v1667
    %v1700 = vmul.f32 %v1545, %v1668
    %v1701 = vmul.f32 %v1547, %v1669
    %v1702 = vmul.f32 %v1549, %v1670
    %v1703 = vmul.f32 %v1551, %v1671
    %v1704 = vmul.f32 %v1553, %v1672
    %v1705 = vmul.f32 %v1555, %v1673
    %v1706 = vmul.f32 %v1557, %v1674
    %v1707 = vmul.f32 %v1559, %v1675
    %v1708 = vmul.f32 %v1561, %v1676
    %v1709 = vmul.f32 %v1563, %v1677
    %v1710 = vmul.f32 %v1565, %v1678
    %v1711 = vmul.f32 %v1567, %v1679
    %v1712 = vmul.f32 %v1569, %v1680
    %v1713 = vmul.f32 %v1571, %v1681
    %v1714 = vmul.f32 %v1573, %v1682
    %v1715 = vmul.f32 %v1575, %v1683
    %v1716 = vmul.f32 %v1577, %v1684
    %v1717 = vmul.f32 %v1579, %v1685
    %v1718 = vmul.f32 %v1581, %v1686
    %v1719 = vmul.f32 %v1583, %v1687
    %v1720 = vmul.f32 %v1585, %v1688
    %v1721 = vmul.f32 %v1587, %v1689
    %v1722 = vmul.f32 %v1589, %v1690
    %v1723 = vmul.f32 %v1591, %v1691
    %v1724 = vmul.f32 %v1593, %v1692
    %v1725 = vmul.f32 %v1595, %v1693
    %v1726 = vmul.f32 %v1597, %v1694
    %v1727 = vmul.f32 %v1599, %v1695
    %v1728 = vpack.c.bf16 %v1697, %v1696
    %v1729 = vpack.c.bf16 %v1699, %v1698
    %v1730 = vpack.c.bf16 %v1701, %v1700
    %v1731 = vpack.c.bf16 %v1703, %v1702
    %v1732 = vpack.c.bf16 %v1705, %v1704
    %v1733 = vpack.c.bf16 %v1707, %v1706
    %v1734 = vpack.c.bf16 %v1709, %v1708
    %v1735 = vpack.c.bf16 %v1711, %v1710
    %v1736 = vpack.c.bf16 %v1713, %v1712
    %v1737 = vpack.c.bf16 %v1715, %v1714
    %v1738 = vpack.c.bf16 %v1717, %v1716
    %v1739 = vpack.c.bf16 %v1719, %v1718
    %v1740 = vpack.c.bf16 %v1721, %v1720
    %v1741 = vpack.c.bf16 %v1723, %v1722
    %v1742 = vpack.c.bf16 %v1725, %v1724
    %v1743 = vpack.c.bf16 %v1727, %v1726
    %v1760 = vunpack.c.l.b16 %v1728
    %v1761 = vunpack.c.h.b16 %v1728
    %v1762 = vunpack.c.l.b16 %v1729
    %v1763 = vunpack.c.h.b16 %v1729
    %v1764 = vunpack.c.l.b16 %v1730
    %v1765 = vunpack.c.h.b16 %v1730
    %v1766 = vunpack.c.l.b16 %v1731
    %v1767 = vunpack.c.h.b16 %v1731
    %v1768 = vunpack.c.l.b16 %v1732
    %v1769 = vunpack.c.h.b16 %v1732
    %v1770 = vunpack.c.l.b16 %v1733
    %v1771 = vunpack.c.h.b16 %v1733
    %v1772 = vunpack.c.l.b16 %v1734
    %v1773 = vunpack.c.h.b16 %v1734
    %v1774 = vunpack.c.l.b16 %v1735
    %v1775 = vunpack.c.h.b16 %v1735
    %v1776 = vunpack.c.l.b16 %v1736
    %v1777 = vunpack.c.h.b16 %v1736
    %v1778 = vunpack.c.l.b16 %v1737
    %v1779 = vunpack.c.h.b16 %v1737
    %v1780 = vunpack.c.l.b16 %v1738
    %v1781 = vunpack.c.h.b16 %v1738
    %v1782 = vunpack.c.l.b16 %v1739
    %v1783 = vunpack.c.h.b16 %v1739
    %v1784 = vunpack.c.l.b16 %v1740
    %v1785 = vunpack.c.h.b16 %v1740
    %v1786 = vunpack.c.l.b16 %v1741
    %v1787 = vunpack.c.h.b16 %v1741
    %v1788 = vunpack.c.l.b16 %v1742
    %v1789 = vunpack.c.h.b16 %v1742
    %v1790 = vunpack.c.l.b16 %v1743
    %v1791 = vunpack.c.h.b16 %v1743
    %v1792 = vpack.c.b16 %v1760, %v1760
    %v1793 = vpack.c.b16 %v1761, %v1761
    %v1794 = vpack.c.b16 %v1762, %v1762
    %v1795 = vpack.c.b16 %v1763, %v1763
    %v1796 = vpack.c.b16 %v1764, %v1764
    %v1797 = vpack.c.b16 %v1765, %v1765
    %v1798 = vpack.c.b16 %v1766, %v1766
    %v1799 = vpack.c.b16 %v1767, %v1767
    %v1800 = vpack.c.b16 %v1768, %v1768
    %v1801 = vpack.c.b16 %v1769, %v1769
    %v1802 = vpack.c.b16 %v1770, %v1770
    %v1803 = vpack.c.b16 %v1771, %v1771
    %v1804 = vpack.c.b16 %v1772, %v1772
    %v1805 = vpack.c.b16 %v1773, %v1773
    %v1806 = vpack.c.b16 %v1774, %v1774
    %v1807 = vpack.c.b16 %v1775, %v1775
    %v1808 = vpack.c.b16 %v1776, %v1776
    %v1809 = vpack.c.b16 %v1777, %v1777
    %v1810 = vpack.c.b16 %v1778, %v1778
    %v1811 = vpack.c.b16 %v1779, %v1779
    %v1812 = vpack.c.b16 %v1780, %v1780
    %v1813 = vpack.c.b16 %v1781, %v1781
    %v1814 = vpack.c.b16 %v1782, %v1782
    %v1815 = vpack.c.b16 %v1783, %v1783
    %v1816 = vpack.c.b16 %v1784, %v1784
    %v1817 = vpack.c.b16 %v1785, %v1785
    %v1818 = vpack.c.b16 %v1786, %v1786
    %v1819 = vpack.c.b16 %v1787, %v1787
    %v1820 = vpack.c.b16 %v1788, %v1788
    %v1821 = vpack.c.b16 %v1789, %v1789
    %v1822 = vpack.c.b16 %v1790, %v1790
    %v1823 = vpack.c.b16 %v1791, %v1791
    %1856 = vst [vmem:[#allocation2] sm:$0xf] %v1792
    %1857 = vst [vmem:[#allocation2 + $0x4] sm:$0xf] %v1793
    %1858 = vst [vmem:[#allocation2 + $0x8] sm:$0xf] %v1794
    %1859 = vst [vmem:[#allocation2 + $0xc] sm:$0xf] %v1795
    %1860 = vst [vmem:[#allocation2 + $0x10] sm:$0xf] %v1796
    %1861 = vst [vmem:[#allocation2 + $0x14] sm:$0xf] %v1797
    %1862 = vst [vmem:[#allocation2 + $0x18] sm:$0xf] %v1798
    %1863 = vst [vmem:[#allocation2 + $0x1c] sm:$0xf] %v1799
    %1864 = vst [vmem:[#allocation2 + $0x20] sm:$0xf] %v1800
    %1865 = vst [vmem:[#allocation2 + $0x24] sm:$0xf] %v1801
    %1866 = vst [vmem:[#allocation2 + $0x28] sm:$0xf] %v1802
    %1867 = vst [vmem:[#allocation2 + $0x2c] sm:$0xf] %v1803
    %1868 = vst [vmem:[#allocation2 + $0x30] sm:$0xf] %v1804
    %1869 = vst [vmem:[#allocation2 + $0x34] sm:$0xf] %v1805
    %1870 = vst [vmem:[#allocation2 + $0x38] sm:$0xf] %v1806
    %1871 = vst [vmem:[#allocation2 + $0x3c] sm:$0xf] %v1807
    %1872 = vst [vmem:[#allocation2 + $0x40] sm:$0xf] %v1808
    %1873 = vst [vmem:[#allocation2 + $0x44] sm:$0xf] %v1809
    %1874 = vst [vmem:[#allocation2 + $0x48] sm:$0xf] %v1810
    %1875 = vst [vmem:[#allocation2 + $0x4c] sm:$0xf] %v1811
    %1876 = vst [vmem:[#allocation2 + $0x50] sm:$0xf] %v1812
    %1877 = vst [vmem:[#allocation2 + $0x54] sm:$0xf] %v1813
    %1878 = vst [vmem:[#allocation2 + $0x58] sm:$0xf] %v1814
    %1879 = vst [vmem:[#allocation2 + $0x5c] sm:$0xf] %v1815
    %1880 = vst [vmem:[#allocation2 + $0x60] sm:$0xf] %v1816
    %1881 = vst [vmem:[#allocation2 + $0x64] sm:$0xf] %v1817
    %1882 = vst [vmem:[#allocation2 + $0x68] sm:$0xf] %v1818
    %1883 = vst [vmem:[#allocation2 + $0x6c] sm:$0xf] %v1819
    %1884 = vst [vmem:[#allocation2 + $0x70] sm:$0xf] %v1820
    %1885 = vst [vmem:[#allocation2 + $0x74] sm:$0xf] %v1821
    %1886 = vst [vmem:[#allocation2 + $0x78] sm:$0xf] %v1822
    %1887 = vst [vmem:[#allocation2 + $0x7c] sm:$0xf] %v1823
    // Predicated region
    $region38: #{tpu_custom_call.1} parent=1 // pred_check
      _
    $region39: #{tpu_custom_call.1} parent=1 // pred_check_branch
      %1889 = sbr.rel (0) target = $region41
    $region40: #{tpu_custom_call.1} parent=1 // pred_region
      %s1891 = ssub.s32 2048, 2048
      %1892 = vsyncadd [#allocation3], %s1891
      %s1893 = sshll.u32 [#allocation2], 4
      %s1894 = int_to_ptr.vmem [resolvable:$true] %s1893
      %1899 = dma.vmem_to_hbm [thread:$0]  %s1894, 2048, %s9, [#allocation3], 64, 64, 4
    $region41: #{tpu_custom_call.1} parent=1 // pred_fallthru
      _
    // Predicated region
    $region42: #{tpu_custom_call.1} parent=1 // pred_check
      _
    $region43: #{tpu_custom_call.1} parent=1 // pred_check_branch
      %1901 = sbr.rel (0) target = $region45
    $region44: #{tpu_custom_call.1} parent=1 // pred_region
      %1902 = dma.done [#allocation3], 2048
    $region45: #{tpu_custom_call.1} parent=1 // pred_fallthru
      _
    %1903 = vsyncpa [#allocation3], 1

</llo_original>
